<compile_context>
chip_gen: v5e
topology: v5e:2x2
jax: 0.10.0
libtpu: 0.0.40
codegen_flags: <defaults>
</compile_context>

<pallas_src>
import functools

import jax
import jax.numpy as jnp
from jax.experimental import pallas as pl
from jax.experimental.pallas import tpu as pltpu


def _round_up(x, m):
    return (x + m - 1) // m * m


def _mlp_kernel(x_ref, w0_ref, gb0_ref, w1_ref, gb1_ref, o_ref,
                stats0, stats1, ss0, ss1,
                *, n_rows, n_pad, tile_n, eps):
    phase = pl.program_id(0)   # 0: layer-0 stats, 1: layer-1 stats, 2: write out
    t = pl.program_id(1)       # batch tile index
    inv_n = jnp.float32(1.0 / n_rows)

    def finalize(stats_ref, gb_ref, ss_ref):
        # Fold BN (training-mode batch stats) into per-feature scale/shift so the
        # per-element work is a single fused multiply-add: y = pre*scale + shift.
        mean = stats_ref[0:1, :] * inv_n
        var = jnp.maximum(stats_ref[1:2, :] * inv_n - mean * mean, 0.0)
        scale = gb_ref[0:1, :] * jax.lax.rsqrt(var + eps)      # gamma * rsqrt(var+eps)
        ss_ref[0:1, :] = scale
        ss_ref[1:2, :] = gb_ref[1:2, :] - mean * scale          # beta - mean*scale

    @pl.when(jnp.logical_and(phase == 0, t == 0))
    def _():
        stats0[...] = jnp.zeros_like(stats0)

    @pl.when(jnp.logical_and(phase == 1, t == 0))
    def _():
        finalize(stats0, gb0_ref, ss0)
        stats1[...] = jnp.zeros_like(stats1)

    @pl.when(jnp.logical_and(phase == 2, t == 0))
    def _():
        finalize(stats1, gb1_ref, ss1)

    # Row-validity mask (only materialized if the batch was padded): padded rows
    # must not contribute to the BatchNorm statistics.
    if n_rows != n_pad:
        rows = t * tile_n + jax.lax.broadcasted_iota(jnp.int32, (tile_n, 1), 0)
        row_mask = jnp.where(rows < n_rows, jnp.float32(1.0), jnp.float32(0.0))
    else:
        row_mask = None

    def accum_stats(pre, stats_ref):
        pm = pre if row_mask is None else pre * row_mask
        stats_ref[0:1, :] += jnp.sum(pm, axis=0, keepdims=True)          # sum
        stats_ref[1:2, :] += jnp.sum(pm * pre, axis=0, keepdims=True)    # sum of squares

    # ---- layer 0 matmul (bf16 MXU inputs, f32 accumulate) — every phase ----
    h_pre = jnp.dot(x_ref[...].astype(jnp.bfloat16), w0_ref[...],
                    preferred_element_type=jnp.float32)

    @pl.when(phase == 0)
    def _():
        accum_stats(h_pre, stats0)

    @pl.when(phase >= 1)
    def _():
        # BN(affine-folded) + ReLU for layer 0, then layer-1 matmul.
        h = jnp.maximum(h_pre * ss0[0:1, :] + ss0[1:2, :], 0.0)
        y_pre = jnp.dot(h.astype(jnp.bfloat16), w1_ref[...],
                        preferred_element_type=jnp.float32)

        @pl.when(phase == 1)
        def _():
            accum_stats(y_pre, stats1)

        @pl.when(phase == 2)
        def _():
            y = jnp.maximum(y_pre * ss1[0:1, :] + ss1[1:2, :], 0.0)
            o_ref[...] = y.astype(o_ref.dtype)
    # NOTE: in phases 0/1 the output tile is written back untouched (its final
    # contents come from phase 2), which is benign.


def mlp_forward(x, w0, gamma0, beta0, w1, gamma1, beta1, *,
                tile_n=256, eps=1e-5):
    """Pallas-backed forward of MLP(nin, nout, nlayer=2, defaults).

    x: (N, nin) f32.  w0: (nin, n_hid) = W0_torch.T.  w1: (n_hid, nout) = W1_torch.T.
    gamma*/beta*: 1-D per-feature BatchNorm1d affine parameters.
    """
    n, nin = x.shape
    n_hid = w0.shape[1]
    nout = w1.shape[1]
    assert w0.shape == (nin, n_hid) and w1.shape == (n_hid, nout)

    # Lane-dense padding of the feature dims (multiples of 128).
    nhid_p = _round_up(n_hid, 128)
    nout_p = _round_up(nout, 128)

    # Batch tiling: tile_n rows per grid step (multiple of 8 sublanes).
    tile_n = max(8, min(_round_up(tile_n, 8), _round_up(n, 8)))
    n_pad = _round_up(n, tile_n)
    nt = n_pad // tile_n

    f32, bf16 = jnp.float32, jnp.bfloat16
    x_p = jnp.pad(x.astype(f32), ((0, n_pad - n), (0, 0)))
    w0_p = jnp.pad(w0.astype(f32), ((0, 0), (0, nhid_p - n_hid))).astype(bf16)
    w1_p = jnp.pad(w1.astype(f32),
                   ((0, nhid_p - n_hid), (0, nout_p - nout))).astype(bf16)
    # gamma/beta packed as one (2, F) array per layer (halves tiny input DMAs).
    # Padded feature columns get gamma=0, beta=0 so they stay exactly zero
    # through BN + ReLU and never pollute the next matmul.
    gb0 = jnp.pad(jnp.stack([gamma0, beta0], axis=0).astype(f32),
                  ((0, 0), (0, nhid_p - n_hid)))
    gb1 = jnp.pad(jnp.stack([gamma1, beta1], axis=0).astype(f32),
                  ((0, 0), (0, nout_p - nout)))

    kernel = functools.partial(_mlp_kernel, n_rows=n, n_pad=n_pad,
                               tile_n=tile_n, eps=eps)

    out = pl.pallas_call(
        kernel,
        out_shape=jax.ShapeDtypeStruct((n_pad, nout_p), jnp.float32),
        grid=(3, nt),                               # (phase, batch tile) — tiles innermost
        in_specs=[
            pl.BlockSpec((tile_n, nin), lambda p, t: (t, 0)),       # x (streamed)
            pl.BlockSpec((nin, nhid_p), lambda p, t: (0, 0)),       # w0 (resident)
            pl.BlockSpec((2, nhid_p), lambda p, t: (0, 0)),         # gamma0/beta0
            pl.BlockSpec((nhid_p, nout_p), lambda p, t: (0, 0)),    # w1 (resident)
            pl.BlockSpec((2, nout_p), lambda p, t: (0, 0)),         # gamma1/beta1
        ],
        out_specs=pl.BlockSpec((tile_n, nout_p), lambda p, t: (t, 0)),
        scratch_shapes=[
            pltpu.VMEM((2, nhid_p), jnp.float32),   # stats0: [sum; sumsq]
            pltpu.VMEM((2, nout_p), jnp.float32),   # stats1: [sum; sumsq]
            pltpu.VMEM((2, nhid_p), jnp.float32),   # ss0:    [scale; shift]
            pltpu.VMEM((2, nout_p), jnp.float32),   # ss1:    [scale; shift]
        ],
        compiler_params=pltpu.CompilerParams(
            # Both axes are sequential: the batch axis accumulates BN stats and
            # the phase axis orders the two-pass normalization.  A v7x dual-TC
            # split would need a feature-axis partition + cross-core stats
            # exchange, which this single-core kernel does not attempt.
            dimension_semantics=("arbitrary", "arbitrary"),
            vmem_limit_bytes=32 * 1024 * 1024,      # sized with headroom for v7x's 64 MiB VMEM
        ),
    )(x_p, w0_p, gb0, w1_p, gb1)

    return out[:n, :nout]


def reference_forward(x, w0, gamma0, beta0, w1, gamma1, beta1, eps=1e-5):
    # Pure-JAX reference with the same math (training-mode BN, biased variance).
    # Matmul inputs are cast to bf16 to mirror the kernel's MXU precision.
    def bn_relu(h, g, b):
        m = jnp.mean(h, axis=0, keepdims=True)
        v = jnp.mean((h - m) ** 2, axis=0, keepdims=True)
        return jnp.maximum((h - m) * jax.lax.rsqrt(v + eps) * g + b, 0.0)

    h = bn_relu(jnp.dot(x.astype(jnp.bfloat16), w0.astype(jnp.bfloat16),
                        preferred_element_type=jnp.float32), gamma0, beta0)
    return bn_relu(jnp.dot(h.astype(jnp.bfloat16), w1.astype(jnp.bfloat16),
                           preferred_element_type=jnp.float32), gamma1, beta1)


if __name__ == "__main__":
    # MLP(nin=64, nout=32) on a (N=1000, 64) batch: exercises batch tiling
    # (4 tiles of 256, last tile partially masked) and feature padding to 128.
    N, nin, nout = 1000, 64, 32
    n_hid = nin  # per the module: n_hid = nin

    key = jax.random.PRNGKey(0)
    k_x, k_w0, k_w1 = jax.random.split(key, 3)

    x = jax.random.normal(k_x, (N, nin), dtype=jnp.float32)

    # Linear weights with PyTorch's default uniform(-1/sqrt(fan_in), +) scale,
    # stored pre-transposed as (in_features, out_features) = W_torch.T.
    bound0 = 1.0 / jnp.sqrt(jnp.float32(nin))
    w0 = jax.random.uniform(k_w0, (nin, n_hid), jnp.float32, -bound0, bound0)
    bound1 = 1.0 / jnp.sqrt(jnp.float32(n_hid))
    w1 = jax.random.uniform(k_w1, (n_hid, nout), jnp.float32, -bound1, bound1)

    # Freshly-initialized BatchNorm1d affine params: gamma=1, beta=0.
    g0 = jnp.ones((n_hid,), jnp.float32)
    b0 = jnp.zeros((n_hid,), jnp.float32)
    g1 = jnp.ones((nout,), jnp.float32)
    b1 = jnp.zeros((nout,), jnp.float32)

    out = jax.block_until_ready(mlp_forward(x, w0, g0, b0, w1, g1, b1, tile_n=256))
    ref = reference_forward(x, w0, g0, b0, w1, g1, b1)

    assert out.shape == (N, nout)
    # bf16 MXU inputs (with f32 accumulation / f32 BN) => ~1e-2-level agreement.
    assert jnp.allclose(out, ref, atol=1e-2, rtol=1e-2), \
        float(jnp.max(jnp.abs(out - ref)))

    print("KERNEL_OK")
</pallas_src>

<mosaic_0001>
module attributes {stable_mosaic.version = 11 : i64} {
  func.func @_mlp_kernel(%arg0: i32, %arg1: i32, %arg2: memref<256x64xf32, #tpu.memory_space<vmem>>, %arg3: memref<64x128xbf16, #tpu.memory_space<vmem>>, %arg4: memref<2x128xf32, #tpu.memory_space<vmem>>, %arg5: memref<128x128xbf16, #tpu.memory_space<vmem>>, %arg6: memref<2x128xf32, #tpu.memory_space<vmem>>, %arg7: memref<256x128xf32, #tpu.memory_space<vmem>>, %arg8: memref<2x128xf32, #tpu.memory_space<vmem>>, %arg9: memref<2x128xf32, #tpu.memory_space<vmem>>, %arg10: memref<2x128xf32, #tpu.memory_space<vmem>>, %arg11: memref<2x128xf32, #tpu.memory_space<vmem>>) attributes {dimension_semantics = [#tpu.dimension_semantics<arbitrary>, #tpu.dimension_semantics<arbitrary>], iteration_bounds = array<i64: 3, 4>, scalar_prefetch = 0 : i64, scratch_operands = 4 : i64, tpu.core_type = #tpu.core_type<tc>, window_params = [{transform_indices = @transform_0, window_bounds = array<i64: 256, 64>}, {pipeline_mode = #tpu.pipeline_mode<synchronous>, transform_indices = @transform_1, window_bounds = array<i64: 64, 128>}, {pipeline_mode = #tpu.pipeline_mode<synchronous>, transform_indices = @transform_2, window_bounds = array<i64: 2, 128>}, {pipeline_mode = #tpu.pipeline_mode<synchronous>, transform_indices = @transform_3, window_bounds = array<i64: 128, 128>}, {pipeline_mode = #tpu.pipeline_mode<synchronous>, transform_indices = @transform_4, window_bounds = array<i64: 2, 128>}, {transform_indices = @transform_5, window_bounds = array<i64: 256, 128>}]} {
    %c0_i32 = arith.constant 0 : i32
    %0 = arith.cmpi eq, %arg0, %c0_i32 : i32
    %c0_i32_0 = arith.constant 0 : i32
    %1 = arith.cmpi eq, %arg1, %c0_i32_0 : i32
    %2 = arith.andi %0, %1 : i1
    %3 = arith.extui %2 : i1 to i32
    %c0_i32_1 = arith.constant 0 : i32
    %4 = arith.cmpi ne, %3, %c0_i32_1 : i32
    scf.if %4 {
      %cst_17 = arith.constant 0.000000e+00 : f32
      %34 = vector.broadcast %cst_17 : f32 to vector<2x128xf32>
      %c0_18 = arith.constant 0 : index
      %c0_19 = arith.constant 0 : index
      %35 = vector.load %arg8[%c0_18, %c0_19] : memref<2x128xf32, #tpu.memory_space<vmem>>, vector<2x128xf32>
      tpu.vector_store %arg8[%c0_18, %c0_19], %34 {strides = array<i32>} : memref<2x128xf32, #tpu.memory_space<vmem>>, vector<2x128xf32>,
    } else {
    }
    %c1_i32 = arith.constant 1 : i32
    %5 = arith.cmpi eq, %arg0, %c1_i32 : i32
    %c0_i32_2 = arith.constant 0 : i32
    %6 = arith.cmpi eq, %arg1, %c0_i32_2 : i32
    %7 = arith.andi %5, %6 : i1
    %8 = arith.extui %7 : i1 to i32
    %cst = arith.constant 1.000000e-03 : f32
    %c0_i32_3 = arith.constant 0 : i32
    %9 = arith.cmpi ne, %8, %c0_i32_3 : i32
    scf.if %9 {
      %c0_17 = arith.constant 0 : index
      %c0_18 = arith.constant 0 : index
      %34 = vector.load %arg8[%c0_17, %c0_18] : memref<2x128xf32, #tpu.memory_space<vmem>>, vector<1x128xf32>
      %35 = vector.broadcast %cst : f32 to vector<1x128xf32>
      %36 = arith.mulf %34, %35 : vector<1x128xf32>
      %c1 = arith.constant 1 : index
      %c0_19 = arith.constant 0 : index
      %37 = vector.load %arg8[%c1, %c0_19] : memref<2x128xf32, #tpu.memory_space<vmem>>, vector<1x128xf32>
      %38 = vector.broadcast %cst : f32 to vector<1x128xf32>
      %39 = arith.mulf %37, %38 : vector<1x128xf32>
      %40 = arith.mulf %36, %36 : vector<1x128xf32>
      %41 = arith.subf %39, %40 : vector<1x128xf32>
      %cst_20 = arith.constant 0.000000e+00 : f32
      %42 = vector.broadcast %cst_20 : f32 to vector<1x128xf32>
      %43 = arith.maximumf %41, %42 : vector<1x128xf32>
      %c0_21 = arith.constant 0 : index
      %c0_22 = arith.constant 0 : index
      %44 = vector.load %arg4[%c0_21, %c0_22] : memref<2x128xf32, #tpu.memory_space<vmem>>, vector<1x128xf32>
      %cst_23 = arith.constant 9.99999974E-6 : f32
      %45 = vector.broadcast %cst_23 : f32 to vector<1x128xf32>
      %46 = arith.addf %43, %45 : vector<1x128xf32>
      %47 = math.rsqrt %46 : vector<1x128xf32>
      %48 = arith.mulf %44, %47 : vector<1x128xf32>
      %c0_24 = arith.constant 0 : index
      %c0_25 = arith.constant 0 : index
      %49 = vector.load %arg10[%c0_24, %c0_25] : memref<2x128xf32, #tpu.memory_space<vmem>>, vector<1x128xf32>
      tpu.vector_store %arg10[%c0_24, %c0_25], %48 {strides = array<i32>} : memref<2x128xf32, #tpu.memory_space<vmem>>, vector<1x128xf32>,
      %c1_26 = arith.constant 1 : index
      %c0_27 = arith.constant 0 : index
      %50 = vector.load %arg4[%c1_26, %c0_27] : memref<2x128xf32, #tpu.memory_space<vmem>>, vector<1x128xf32>
      %51 = arith.mulf %36, %48 : vector<1x128xf32>
      %52 = arith.subf %50, %51 : vector<1x128xf32>
      %c1_28 = arith.constant 1 : index
      %c0_29 = arith.constant 0 : index
      %53 = vector.load %arg10[%c1_28, %c0_29] : memref<2x128xf32, #tpu.memory_space<vmem>>, vector<1x128xf32>
      tpu.vector_store %arg10[%c1_28, %c0_29], %52 {strides = array<i32>} : memref<2x128xf32, #tpu.memory_space<vmem>>, vector<1x128xf32>,
      %cst_30 = arith.constant 0.000000e+00 : f32
      %54 = vector.broadcast %cst_30 : f32 to vector<2x128xf32>
      %c0_31 = arith.constant 0 : index
      %c0_32 = arith.constant 0 : index
      %55 = vector.load %arg9[%c0_31, %c0_32] : memref<2x128xf32, #tpu.memory_space<vmem>>, vector<2x128xf32>
      tpu.vector_store %arg9[%c0_31, %c0_32], %54 {strides = array<i32>} : memref<2x128xf32, #tpu.memory_space<vmem>>, vector<2x128xf32>,
    } else {
    }
    %c2_i32 = arith.constant 2 : i32
    %10 = arith.cmpi eq, %arg0, %c2_i32 : i32
    %c0_i32_4 = arith.constant 0 : i32
    %11 = arith.cmpi eq, %arg1, %c0_i32_4 : i32
    %12 = arith.andi %10, %11 : i1
    %13 = arith.extui %12 : i1 to i32
    %cst_5 = arith.constant 1.000000e-03 : f32
    %c0_i32_6 = arith.constant 0 : i32
    %14 = arith.cmpi ne, %13, %c0_i32_6 : i32
    scf.if %14 {
      %c0_17 = arith.constant 0 : index
      %c0_18 = arith.constant 0 : index
      %34 = vector.load %arg9[%c0_17, %c0_18] : memref<2x128xf32, #tpu.memory_space<vmem>>, vector<1x128xf32>
      %35 = vector.broadcast %cst_5 : f32 to vector<1x128xf32>
      %36 = arith.mulf %34, %35 : vector<1x128xf32>
      %c1 = arith.constant 1 : index
      %c0_19 = arith.constant 0 : index
      %37 = vector.load %arg9[%c1, %c0_19] : memref<2x128xf32, #tpu.memory_space<vmem>>, vector<1x128xf32>
      %38 = vector.broadcast %cst_5 : f32 to vector<1x128xf32>
      %39 = arith.mulf %37, %38 : vector<1x128xf32>
      %40 = arith.mulf %36, %36 : vector<1x128xf32>
      %41 = arith.subf %39, %40 : vector<1x128xf32>
      %cst_20 = arith.constant 0.000000e+00 : f32
      %42 = vector.broadcast %cst_20 : f32 to vector<1x128xf32>
      %43 = arith.maximumf %41, %42 : vector<1x128xf32>
      %c0_21 = arith.constant 0 : index
      %c0_22 = arith.constant 0 : index
      %44 = vector.load %arg6[%c0_21, %c0_22] : memref<2x128xf32, #tpu.memory_space<vmem>>, vector<1x128xf32>
      %cst_23 = arith.constant 9.99999974E-6 : f32
      %45 = vector.broadcast %cst_23 : f32 to vector<1x128xf32>
      %46 = arith.addf %43, %45 : vector<1x128xf32>
      %47 = math.rsqrt %46 : vector<1x128xf32>
      %48 = arith.mulf %44, %47 : vector<1x128xf32>
      %c0_24 = arith.constant 0 : index
      %c0_25 = arith.constant 0 : index
      %49 = vector.load %arg11[%c0_24, %c0_25] : memref<2x128xf32, #tpu.memory_space<vmem>>, vector<1x128xf32>
      tpu.vector_store %arg11[%c0_24, %c0_25], %48 {strides = array<i32>} : memref<2x128xf32, #tpu.memory_space<vmem>>, vector<1x128xf32>,
      %c1_26 = arith.constant 1 : index
      %c0_27 = arith.constant 0 : index
      %50 = vector.load %arg6[%c1_26, %c0_27] : memref<2x128xf32, #tpu.memory_space<vmem>>, vector<1x128xf32>
      %51 = arith.mulf %36, %48 : vector<1x128xf32>
      %52 = arith.subf %50, %51 : vector<1x128xf32>
      %c1_28 = arith.constant 1 : index
      %c0_29 = arith.constant 0 : index
      %53 = vector.load %arg11[%c1_28, %c0_29] : memref<2x128xf32, #tpu.memory_space<vmem>>, vector<1x128xf32>
      tpu.vector_store %arg11[%c1_28, %c0_29], %52 {strides = array<i32>} : memref<2x128xf32, #tpu.memory_space<vmem>>, vector<1x128xf32>,
    } else {
    }
    %c256_i32 = arith.constant 256 : i32
    %15 = arith.muli %arg1, %c256_i32 : i32
    %16 = tpu.iota {dimensions = array<i32: 0>} : vector<256x1xi32>
    %17 = vector.broadcast %15 : i32 to vector<256x1xi32>
    %18 = arith.addi %17, %16 : vector<256x1xi32>
    %c1000_i32 = arith.constant 1000 : i32
    %19 = vector.broadcast %c1000_i32 : i32 to vector<256x1xi32>
    %20 = arith.cmpi slt, %18, %19 : vector<256x1xi32>
    %cst_7 = arith.constant 1.000000e+00 : f32
    %cst_8 = arith.constant 0.000000e+00 : f32
    %21 = vector.broadcast %cst_7 : f32 to vector<256x1xf32>
    %22 = vector.broadcast %cst_8 : f32 to vector<256x1xf32>
    %23 = arith.select %20, %21, %22 : vector<256x1xi1>, vector<256x1xf32>
    %c0 = arith.constant 0 : index
    %c0_9 = arith.constant 0 : index
    %24 = vector.load %arg2[%c0, %c0_9] : memref<256x64xf32, #tpu.memory_space<vmem>>, vector<256x64xf32>
    %25 = arith.truncf %24 : vector<256x64xf32> to vector<256x64xbf16>
    %c0_10 = arith.constant 0 : index
    %c0_11 = arith.constant 0 : index
    %26 = vector.load %arg3[%c0_10, %c0_11] : memref<64x128xbf16, #tpu.memory_space<vmem>>, vector<64x128xbf16>
    %cst_12 = arith.constant dense<0.000000e+00> : vector<256x128xf32>
    %27 = tpu.matmul %25, %26, %cst_12 {dimension_numbers = #tpu.dot_dimension_numbers<[1], [0], [0], [1], [0, 0, 1, 1], [], []>} : vector<256x64xbf16>, vector<64x128xbf16>, vector<256x128xf32> -> vector<256x128xf32>
    %c0_i32_13 = arith.constant 0 : i32
    %28 = arith.cmpi eq, %arg0, %c0_i32_13 : i32
    %29 = arith.extui %28 : i1 to i32
    %c0_i32_14 = arith.constant 0 : i32
    %30 = arith.cmpi ne, %29, %c0_i32_14 : i32
    scf.if %30 {
      %34 = vector.broadcast %23 : vector<256x1xf32> to vector<256x128xf32>
      %35 = arith.mulf %27, %34 : vector<256x128xf32>
      %c0_17 = arith.constant 0 : index
      %c0_18 = arith.constant 0 : index
      %36 = vector.load %arg8[%c0_17, %c0_18] : memref<2x128xf32, #tpu.memory_space<vmem>>, vector<1x128xf32>
      %cst_19 = arith.constant dense<0.000000e+00> : vector<128xf32>
      %37 = vector.multi_reduction <add>, %35, %cst_19 [0] : vector<256x128xf32> to vector<128xf32>
      %38 = vector.shape_cast %37 : vector<128xf32> to vector<1x128xf32>
      %39 = arith.addf %36, %38 : vector<1x128xf32>
      %c0_20 = arith.constant 0 : index
      %c0_21 = arith.constant 0 : index
      %40 = vector.load %arg8[%c0_20, %c0_21] : memref<2x128xf32, #tpu.memory_space<vmem>>, vector<1x128xf32>
      tpu.vector_store %arg8[%c0_20, %c0_21], %39 {strides = array<i32>} : memref<2x128xf32, #tpu.memory_space<vmem>>, vector<1x128xf32>,
      %c1 = arith.constant 1 : index
      %c0_22 = arith.constant 0 : index
      %41 = vector.load %arg8[%c1, %c0_22] : memref<2x128xf32, #tpu.memory_space<vmem>>, vector<1x128xf32>
      %42 = arith.mulf %35, %27 : vector<256x128xf32>
      %cst_23 = arith.constant dense<0.000000e+00> : vector<128xf32>
      %43 = vector.multi_reduction <add>, %42, %cst_23 [0] : vector<256x128xf32> to vector<128xf32>
      %44 = vector.shape_cast %43 : vector<128xf32> to vector<1x128xf32>
      %45 = arith.addf %41, %44 : vector<1x128xf32>
      %c1_24 = arith.constant 1 : index
      %c0_25 = arith.constant 0 : index
      %46 = vector.load %arg8[%c1_24, %c0_25] : memref<2x128xf32, #tpu.memory_space<vmem>>, vector<1x128xf32>
      tpu.vector_store %arg8[%c1_24, %c0_25], %45 {strides = array<i32>} : memref<2x128xf32, #tpu.memory_space<vmem>>, vector<1x128xf32>,
    } else {
    }
    %c1_i32_15 = arith.constant 1 : i32
    %31 = arith.cmpi sge, %arg0, %c1_i32_15 : i32
    %32 = arith.extui %31 : i1 to i32
    %c0_i32_16 = arith.constant 0 : i32
    %33 = arith.cmpi ne, %32, %c0_i32_16 : i32
    scf.if %33 {
      %c0_17 = arith.constant 0 : index
      %c0_18 = arith.constant 0 : index
      %34 = vector.load %arg10[%c0_17, %c0_18] : memref<2x128xf32, #tpu.memory_space<vmem>>, vector<1x128xf32>
      %35 = vector.broadcast %34 : vector<1x128xf32> to vector<256x128xf32>
      %36 = arith.mulf %27, %35 : vector<256x128xf32>
      %c1 = arith.constant 1 : index
      %c0_19 = arith.constant 0 : index
      %37 = vector.load %arg10[%c1, %c0_19] : memref<2x128xf32, #tpu.memory_space<vmem>>, vector<1x128xf32>
      %38 = vector.broadcast %37 : vector<1x128xf32> to vector<256x128xf32>
      %39 = arith.addf %36, %38 : vector<256x128xf32>
      %cst_20 = arith.constant 0.000000e+00 : f32
      %40 = vector.broadcast %cst_20 : f32 to vector<256x128xf32>
      %41 = arith.maximumf %39, %40 : vector<256x128xf32>
      %42 = arith.truncf %41 : vector<256x128xf32> to vector<256x128xbf16>
      %c0_21 = arith.constant 0 : index
      %c0_22 = arith.constant 0 : index
      %43 = vector.load %arg5[%c0_21, %c0_22] : memref<128x128xbf16, #tpu.memory_space<vmem>>, vector<128x128xbf16>
      %cst_23 = arith.constant dense<0.000000e+00> : vector<256x128xf32>
      %44 = tpu.matmul %42, %43, %cst_23 {dimension_numbers = #tpu.dot_dimension_numbers<[1], [0], [0], [1], [0, 0, 1, 1], [], []>} : vector<256x128xbf16>, vector<128x128xbf16>, vector<256x128xf32> -> vector<256x128xf32>
      %c1_i32_24 = arith.constant 1 : i32
      %45 = arith.cmpi eq, %arg0, %c1_i32_24 : i32
      %46 = arith.extui %45 : i1 to i32
      %c0_i32_25 = arith.constant 0 : i32
      %47 = arith.cmpi ne, %46, %c0_i32_25 : i32
      scf.if %47 {
        %51 = vector.broadcast %23 : vector<256x1xf32> to vector<256x128xf32>
        %52 = arith.mulf %44, %51 : vector<256x128xf32>
        %c0_28 = arith.constant 0 : index
        %c0_29 = arith.constant 0 : index
        %53 = vector.load %arg9[%c0_28, %c0_29] : memref<2x128xf32, #tpu.memory_space<vmem>>, vector<1x128xf32>
        %cst_30 = arith.constant dense<0.000000e+00> : vector<128xf32>
        %54 = vector.multi_reduction <add>, %52, %cst_30 [0] : vector<256x128xf32> to vector<128xf32>
        %55 = vector.shape_cast %54 : vector<128xf32> to vector<1x128xf32>
        %56 = arith.addf %53, %55 : vector<1x128xf32>
        %c0_31 = arith.constant 0 : index
        %c0_32 = arith.constant 0 : index
        %57 = vector.load %arg9[%c0_31, %c0_32] : memref<2x128xf32, #tpu.memory_space<vmem>>, vector<1x128xf32>
        tpu.vector_store %arg9[%c0_31, %c0_32], %56 {strides = array<i32>} : memref<2x128xf32, #tpu.memory_space<vmem>>, vector<1x128xf32>,
        %c1_33 = arith.constant 1 : index
        %c0_34 = arith.constant 0 : index
        %58 = vector.load %arg9[%c1_33, %c0_34] : memref<2x128xf32, #tpu.memory_space<vmem>>, vector<1x128xf32>
        %59 = arith.mulf %52, %44 : vector<256x128xf32>
        %cst_35 = arith.constant dense<0.000000e+00> : vector<128xf32>
        %60 = vector.multi_reduction <add>, %59, %cst_35 [0] : vector<256x128xf32> to vector<128xf32>
        %61 = vector.shape_cast %60 : vector<128xf32> to vector<1x128xf32>
        %62 = arith.addf %58, %61 : vector<1x128xf32>
        %c1_36 = arith.constant 1 : index
        %c0_37 = arith.constant 0 : index
        %63 = vector.load %arg9[%c1_36, %c0_37] : memref<2x128xf32, #tpu.memory_space<vmem>>, vector<1x128xf32>
        tpu.vector_store %arg9[%c1_36, %c0_37], %62 {strides = array<i32>} : memref<2x128xf32, #tpu.memory_space<vmem>>, vector<1x128xf32>,
      } else {
      }
      %c2_i32_26 = arith.constant 2 : i32
      %48 = arith.cmpi eq, %arg0, %c2_i32_26 : i32
      %49 = arith.extui %48 : i1 to i32
      %c0_i32_27 = arith.constant 0 : i32
      %50 = arith.cmpi ne, %49, %c0_i32_27 : i32
      scf.if %50 {
        %c0_28 = arith.constant 0 : index
        %c0_29 = arith.constant 0 : index
        %51 = vector.load %arg11[%c0_28, %c0_29] : memref<2x128xf32, #tpu.memory_space<vmem>>, vector<1x128xf32>
        %52 = vector.broadcast %51 : vector<1x128xf32> to vector<256x128xf32>
        %53 = arith.mulf %44, %52 : vector<256x128xf32>
        %c1_30 = arith.constant 1 : index
        %c0_31 = arith.constant 0 : index
        %54 = vector.load %arg11[%c1_30, %c0_31] : memref<2x128xf32, #tpu.memory_space<vmem>>, vector<1x128xf32>
        %55 = vector.broadcast %54 : vector<1x128xf32> to vector<256x128xf32>
        %56 = arith.addf %53, %55 : vector<256x128xf32>
        %cst_32 = arith.constant 0.000000e+00 : f32
        %57 = vector.broadcast %cst_32 : f32 to vector<256x128xf32>
        %58 = arith.maximumf %56, %57 : vector<256x128xf32>
        %c0_33 = arith.constant 0 : index
        %c0_34 = arith.constant 0 : index
        %59 = vector.load %arg7[%c0_33, %c0_34] : memref<256x128xf32, #tpu.memory_space<vmem>>, vector<256x128xf32>
        tpu.vector_store %arg7[%c0_33, %c0_34], %58 {strides = array<i32>} : memref<256x128xf32, #tpu.memory_space<vmem>>, vector<256x128xf32>,
      } else {
      }
    } else {
    }
    return
  }
  func.func @transform_0(%arg0: i32, %arg1: i32) -> (i32, i32) {
    %c0_i32 = arith.constant 0 : i32
    %c0_i32_0 = arith.constant 0 : i32
    return %arg1, %c0_i32 : i32, i32
  }
  func.func @transform_1(%arg0: i32, %arg1: i32) -> (i32, i32) {
    %c0_i32 = arith.constant 0 : i32
    %c0_i32_0 = arith.constant 0 : i32
    %c0_i32_1 = arith.constant 0 : i32
    return %c0_i32, %c0_i32_0 : i32, i32
  }
  func.func @transform_2(%arg0: i32, %arg1: i32) -> (i32, i32) {
    %c0_i32 = arith.constant 0 : i32
    %c0_i32_0 = arith.constant 0 : i32
    %c0_i32_1 = arith.constant 0 : i32
    return %c0_i32, %c0_i32_0 : i32, i32
  }
  func.func @transform_3(%arg0: i32, %arg1: i32) -> (i32, i32) {
    %c0_i32 = arith.constant 0 : i32
    %c0_i32_0 = arith.constant 0 : i32
    %c0_i32_1 = arith.constant 0 : i32
    return %c0_i32, %c0_i32_0 : i32, i32
  }
  func.func @transform_4(%arg0: i32, %arg1: i32) -> (i32, i32) {
    %c0_i32 = arith.constant 0 : i32
    %c0_i32_0 = arith.constant 0 : i32
    %c0_i32_1 = arith.constant 0 : i32
    return %c0_i32, %c0_i32_0 : i32, i32
  }
  func.func @transform_5(%arg0: i32, %arg1: i32) -> (i32, i32) {
    %c0_i32 = arith.constant 0 : i32
    %c0_i32_0 = arith.constant 0 : i32
    return %arg1, %c0_i32 : i32, i32
  }
}

</mosaic_0001>

<llo_original>
// kernel: tpu_custom_call.1
$region0: #{tpu_custom_call.1}
  #allocation0 [shape = 'u32[]', space=smem, size = 0x4, offset = 0x4, fixed_abs, tag = 'smem constant byte address 0x4 - core index']
  #allocation1 [shape = 'u32[72,128]{1,0:T(1,128)}', space=vmem, size = 0x9000, scoped, tag = 'internal scratch']
  #allocation2 [shape = 'f32[2,128]{1,0:T(2,128)}', space=vmem, size = 0x400, scoped, tag = 'scratch operand']
  #allocation3 [shape = 'f32[2,128]{1,0:T(2,128)}', space=vmem, size = 0x400, scoped, tag = 'scratch operand']
  #allocation4 [shape = 'f32[2,128]{1,0:T(2,128)}', space=vmem, size = 0x400, scoped, tag = 'scratch operand']
  #allocation5 [shape = 'f32[2,128]{1,0:T(2,128)}', space=vmem, size = 0x400, scoped, tag = 'scratch operand']
  %s0 = inlined_call_operand.vmem [shape: f32[1024,64], index: 0, kind: input, shape index: {}]
  %s1 = inlined_call_operand.vmem [shape: bf16[64,128], index: 1, kind: input, shape index: {}]
  %s2 = inlined_call_operand.vmem [shape: f32[2,128], index: 2, kind: input, shape index: {}]
  %s3 = inlined_call_operand.vmem [shape: bf16[128,128], index: 3, kind: input, shape index: {}]
  %s4 = inlined_call_operand.vmem [shape: f32[2,128], index: 4, kind: input, shape index: {}]
  %s5 = inlined_call_operand.hbm [shape: f32[1024,128], index: 5, kind: output, shape index: {}]
  %s6 = sld [smem:[#allocation0]]
  $region81: #{tpu_custom_call.1} parent=0
    _
  %s8 = ssub.s32 1, %s6
  %s9 = scalar_select 0, %s8, %s6
  $region1: #{tpu_custom_call.1} parent=0
    #allocation6 [shape = 'u8[262144]{0}', space=vmem, size = 0x40000, scoped, tag = 'output window, operand 0']
    #allocation7 [shape = 's32[2]{0}', space=sflag, size = 0x8, scoped, tag = 'scoped memory for tpu_custom_call.1']
    %10 = vsyncpa [#allocation7], 0
    %s11 = scalar_lea.sflag [#allocation7], 1
    %12 = vsyncpa %s11, 0
    loop: start=0, step=1, limit=14
    $region2: #{tpu_custom_call.1} parent=1 // loop_pre_header
      _
    $region3: #{tpu_custom_call.1} parent=1 // loop_header
      %s14 = sphi 0, %s18
      %p15 = scmp.ge.s32.totalorder %s14, 14
      %s21 = sphi 0, %s33
      %s22 = sphi 0, %s29
      %s23 = sphi 0, %s21
      %s24 = sphi 0, %s22
      %s25 = sphi 0, %s23
      %s26 = sphi 0, %s24
      %s36 = sphi 0, %s38
      %s39 = sphi 0, %s36
      %s40 = sphi 0, %s39
      %s56 = sphi 0, %s40
      %s60 = sphi 0, %s60
      %s62 = sphi 0, %s60
      %s63 = sphi 0, %s62
      %s77 = sphi 0, %s63
      %s81 = sphi 0, %s81
      %s83 = sphi 0, %s81
      %s84 = sphi 0, %s83
      %s98 = sphi 0, %s84
      %s102 = sphi 0, %s102
      %s104 = sphi 0, %s102
      %s105 = sphi 0, %s104
      %s119 = sphi 0, %s105
      %s123 = sphi 0, %s123
      %s125 = sphi 0, %s123
      %s126 = sphi 0, %s125
      %s140 = sphi 0, %s126
      %s146 = sphi 0, %s148
      %s149 = sphi 0, %s146
      %s150 = sphi 0, %s149
      %s166 = sphi 0, %s150
    $region4: #{tpu_custom_call.1} parent=1 // loop_header_branch
      %17 = sbr.rel (%p15) target = $region8
    $region5: #{tpu_custom_call.1} parent=1 // loop_body
      %s19 = ssub.s32 %s14, 1
      %s20 = ssub.s32 %s14, 2
      %s27 = sadd.s32 1, %s22
      %p28 = scmp.ge.s32.totalorder %s27, 4
      %s29 = scalar_select %p28, 0, %s27
      %s30 = sadd.s32 1, %s21
      %s31 = scalar_select %p28, %s30, %s21
      %p32 = scmp.ge.s32.totalorder %s31, 3
      %s33 = scalar_select %p32, 0, %s31
      %s34 = ssub.s32 %s22, %s29
      %p35 = scmp.eq.s32.totalorder %s34, 0
      %s37 = sadd.s32 %s36, 1
      %s38 = scalar_select %p35, %s36, %s37
      %p41 = pneg %p35
      %p42 = scmp.eq.s32.totalorder %s14, 11
      %p43 = por %p41, %p42
      %p44 = scmp.ne.s32.totalorder %s36, %s39
      %p45 = scmp.eq.s32.totalorder %s14, 0
      %p46 = por %p44, %p45
      %p47 = scmp.ne.s32.totalorder %s36, %s39
      %p48 = scmp.eq.s32.totalorder %s19, 11
      %p49 = por %p47, %p48
      %p50 = scmp.ne.s32.totalorder %s39, %s40
      %p51 = scmp.eq.s32.totalorder %s19, 0
      %p52 = por %p50, %p51
      %p53 = scmp.ne.s32.totalorder %s39, %s40
      %p54 = scmp.eq.s32.totalorder %s20, 11
      %p55 = por %p53, %p54
      %p57 = scmp.ne.s32.totalorder %s40, %s56
      %p58 = scmp.eq.s32.totalorder %s20, 0
      %p59 = por %p57, %p58
      %s61 = sadd.s32 %s60, 1
      %p64 = scmp.eq.s32.totalorder %s14, 11
      %p65 = scmp.ne.s32.totalorder %s60, %s62
      %p66 = scmp.eq.s32.totalorder %s14, 0
      %p67 = por %p65, %p66
      %p68 = scmp.ne.s32.totalorder %s60, %s62
      %p69 = scmp.eq.s32.totalorder %s19, 11
      %p70 = por %p68, %p69
      %p71 = scmp.ne.s32.totalorder %s62, %s63
      %p72 = scmp.eq.s32.totalorder %s19, 0
      %p73 = por %p71, %p72
      %p74 = scmp.ne.s32.totalorder %s62, %s63
      %p75 = scmp.eq.s32.totalorder %s20, 11
      %p76 = por %p74, %p75
      %p78 = scmp.ne.s32.totalorder %s63, %s77
      %p79 = scmp.eq.s32.totalorder %s20, 0
      %p80 = por %p78, %p79
      %s82 = sadd.s32 %s81, 1
      %p85 = scmp.eq.s32.totalorder %s14, 11
      %p86 = scmp.ne.s32.totalorder %s81, %s83
      %p87 = scmp.eq.s32.totalorder %s14, 0
      %p88 = por %p86, %p87
      %p89 = scmp.ne.s32.totalorder %s81, %s83
      %p90 = scmp.eq.s32.totalorder %s19, 11
      %p91 = por %p89, %p90
      %p92 = scmp.ne.s32.totalorder %s83, %s84
      %p93 = scmp.eq.s32.totalorder %s19, 0
      %p94 = por %p92, %p93
      %p95 = scmp.ne.s32.totalorder %s83, %s84
      %p96 = scmp.eq.s32.totalorder %s20, 11
      %p97 = por %p95, %p96
      %p99 = scmp.ne.s32.totalorder %s84, %s98
      %p100 = scmp.eq.s32.totalorder %s20, 0
      %p101 = por %p99, %p100
      %s103 = sadd.s32 %s102, 1
      %p106 = scmp.eq.s32.totalorder %s14, 11
      %p107 = scmp.ne.s32.totalorder %s102, %s104
      %p108 = scmp.eq.s32.totalorder %s14, 0
      %p109 = por %p107, %p108
      %p110 = scmp.ne.s32.totalorder %s102, %s104
      %p111 = scmp.eq.s32.totalorder %s19, 11
      %p112 = por %p110, %p111
      %p113 = scmp.ne.s32.totalorder %s104, %s105
      %p114 = scmp.eq.s32.totalorder %s19, 0
      %p115 = por %p113, %p114
      %p116 = scmp.ne.s32.totalorder %s104, %s105
      %p117 = scmp.eq.s32.totalorder %s20, 11
      %p118 = por %p116, %p117
      %p120 = scmp.ne.s32.totalorder %s105, %s119
      %p121 = scmp.eq.s32.totalorder %s20, 0
      %p122 = por %p120, %p121
      %s124 = sadd.s32 %s123, 1
      %p127 = scmp.eq.s32.totalorder %s14, 11
      %p128 = scmp.ne.s32.totalorder %s123, %s125
      %p129 = scmp.eq.s32.totalorder %s14, 0
      %p130 = por %p128, %p129
      %p131 = scmp.ne.s32.totalorder %s123, %s125
      %p132 = scmp.eq.s32.totalorder %s19, 11
      %p133 = por %p131, %p132
      %p134 = scmp.ne.s32.totalorder %s125, %s126
      %p135 = scmp.eq.s32.totalorder %s19, 0
      %p136 = por %p134, %p135
      %p137 = scmp.ne.s32.totalorder %s125, %s126
      %p138 = scmp.eq.s32.totalorder %s20, 11
      %p139 = por %p137, %p138
      %p141 = scmp.ne.s32.totalorder %s126, %s140
      %p142 = scmp.eq.s32.totalorder %s20, 0
      %p143 = por %p141, %p142
      %s144 = ssub.s32 %s22, %s29
      %p145 = scmp.eq.s32.totalorder %s144, 0
      %s147 = sadd.s32 %s146, 1
      %s148 = scalar_select %p145, %s146, %s147
      %p151 = pneg %p145
      %p152 = scmp.eq.s32.totalorder %s14, 11
      %p153 = por %p151, %p152
      %p154 = scmp.ne.s32.totalorder %s146, %s149
      %p155 = scmp.eq.s32.totalorder %s14, 0
      %p156 = por %p154, %p155
      %p157 = scmp.ne.s32.totalorder %s146, %s149
      %p158 = scmp.eq.s32.totalorder %s19, 11
      %p159 = por %p157, %p158
      %p160 = scmp.ne.s32.totalorder %s149, %s150
      %p161 = scmp.eq.s32.totalorder %s19, 0
      %p162 = por %p160, %p161
      %p163 = scmp.ne.s32.totalorder %s149, %s150
      %p164 = scmp.eq.s32.totalorder %s20, 11
      %p165 = por %p163, %p164
      %p167 = scmp.ne.s32.totalorder %s150, %s166
      %p168 = scmp.eq.s32.totalorder %s20, 0
      %p169 = por %p167, %p168
      %p170 = scmp.le.s32.totalorder 1, %s14
      %p171 = scmp.lt.s32.totalorder %s14, 13
      %p172 = pnand %p170, %p171
      %p173 = pneg %p172
      // Predicated region
      $region9: #{tpu_custom_call.1} parent=5 // pred_check
        _
      $region10: #{tpu_custom_call.1} parent=5 // pred_check_branch
        %175 = sbr.rel (%p172) target = $region12
      $region11: #{tpu_custom_call.1} parent=5 // pred_region
        %s176 = ssub.s32 %s14, 1
        // Predicated region
        $region13: #{tpu_custom_call.1} parent=11 // pred_check
          %p177 = pneg %p73
        $region14: #{tpu_custom_call.1} parent=11 // pred_check_branch
          %179 = sbr.rel (%p177) target = $region16
        $region15: #{tpu_custom_call.1} parent=11 // pred_region
          _
        $region16: #{tpu_custom_call.1} parent=11 // pred_fallthru
          _
        // Predicated region
        $region17: #{tpu_custom_call.1} parent=11 // pred_check
          %p180 = pneg %p94
        $region18: #{tpu_custom_call.1} parent=11 // pred_check_branch
          %182 = sbr.rel (%p180) target = $region20
        $region19: #{tpu_custom_call.1} parent=11 // pred_region
          _
        $region20: #{tpu_custom_call.1} parent=11 // pred_fallthru
          _
        // Predicated region
        $region21: #{tpu_custom_call.1} parent=11 // pred_check
          %p183 = pneg %p115
        $region22: #{tpu_custom_call.1} parent=11 // pred_check_branch
          %185 = sbr.rel (%p183) target = $region24
        $region23: #{tpu_custom_call.1} parent=11 // pred_region
          _
        $region24: #{tpu_custom_call.1} parent=11 // pred_fallthru
          _
        // Predicated region
        $region25: #{tpu_custom_call.1} parent=11 // pred_check
          %p186 = pneg %p136
        $region26: #{tpu_custom_call.1} parent=11 // pred_check_branch
          %188 = sbr.rel (%p186) target = $region28
        $region27: #{tpu_custom_call.1} parent=11 // pred_region
          _
        $region28: #{tpu_custom_call.1} parent=11 // pred_fallthru
          _
      $region12: #{tpu_custom_call.1} parent=5 // pred_fallthru
        _
      %p189 = scmp.lt.s32.totalorder %s14, 12
      // Predicated region
      $region29: #{tpu_custom_call.1} parent=5 // pred_check
        %p190 = pneg %p189
      $region30: #{tpu_custom_call.1} parent=5 // pred_check_branch
        %192 = sbr.rel (%p190) target = $region32
      $region31: #{tpu_custom_call.1} parent=5 // pred_region
        // Predicated region
        $region33: #{tpu_custom_call.1} parent=31 // pred_check
          %p193 = pneg %p46
        $region34: #{tpu_custom_call.1} parent=31 // pred_check_branch
          %195 = sbr.rel (%p193) target = $region36
        $region35: #{tpu_custom_call.1} parent=31 // pred_region
          %s196 = smul.u32 32, %s22
          %p197 = scmp.lt.s32.totalorder %s196, 127
          %s198 = scalar_select %p197, %s196, 127
          %s199 = smul.addr %s198, 8
          %s200 = scalar_lea.vmem %s0, %s199
          %s201 = smul.u32 32, %s22
        $region36: #{tpu_custom_call.1} parent=31 // pred_fallthru
          _
      $region32: #{tpu_custom_call.1} parent=5 // pred_fallthru
        _
      %p202 = scmp.le.s32.totalorder 1, %s14
      %p203 = scmp.lt.s32.totalorder %s14, 13
      %p204 = pnand %p202, %p203
      %p205 = pneg %p204
      // Predicated region
      $region37: #{tpu_custom_call.1} parent=5 // pred_check
        _
      $region38: #{tpu_custom_call.1} parent=5 // pred_check_branch
        %207 = sbr.rel (%p204) target = $region40
      $region39: #{tpu_custom_call.1} parent=5 // pred_region
        %s208 = ssub.s32 %s14, 1
        %s209 = smul.u32 32, %s24
        %p210 = scmp.lt.s32.totalorder %s209, 127
        %s211 = scalar_select %p210, %s209, 127
        %s212 = smul.addr %s211, 8
        %s213 = scalar_lea.vmem %s0, %s212
        %p214 = pneg %p52
        %p215 = pneg %p49
        %p216 = pneg %p73
        %p217 = pneg %p70
        %p218 = pneg %p94
        %p219 = pneg %p91
        %p220 = pneg %p115
        %p221 = pneg %p112
        %p222 = pneg %p136
        %p223 = pneg %p133
        %p224 = pneg %p162
        %p225 = pneg %p159
        %s226 = sand.u32 %s149, 1
        %s227 = scalar_lea.sflag [#allocation7], %s226
        %s228 = sand.u32 %s149, 1
        %s229 = smul.addr %s228, 256
        %s230 = scalar_lea.vmem [#allocation6], %s229
        %s231 = smul.u32 32, %s24
        %p232 = scmp.lt.s32.totalorder %s231, 127
        %s233 = scalar_select %p232, %s231, 127
        %s234 = smul.addr %s233, 8
        %s235 = scalar_lea.vmem %s0, %s234
        %s236 = smul.u32 32, %s24
        %s237 = smul.u32 32, %s24
        %p239 = scmp.eq.s32.totalorder %s23, 0
        %p240 = scmp.eq.s32.totalorder %s24, 0
        %p241 = pnand %p239, %p240
        %p242 = pneg %p241
        // Predicated region
        $region41: #{tpu_custom_call.1} parent=39 // pred_check
          _
        $region42: #{tpu_custom_call.1} parent=39 // pred_check_branch
          %244 = sbr.rel (%p241) target = $region44
        $region43: #{tpu_custom_call.1} parent=39 // pred_region
          %245 = vst [vmem:[#allocation2] sm:$0x3] 0.0
        $region44: #{tpu_custom_call.1} parent=39 // pred_fallthru
          _
        %p246 = scmp.eq.s32.totalorder %s23, 1
        %p247 = pnand %p246, %p240
        %p248 = pneg %p247
        // Predicated region
        $region45: #{tpu_custom_call.1} parent=39 // pred_check
          _
        $region46: #{tpu_custom_call.1} parent=39 // pred_check_branch
          %250 = sbr.rel (%p247) target = $region48
        $region47: #{tpu_custom_call.1} parent=39 // pred_region
          %v251 = vld [vmem:[#allocation2] sm:$0x1]
          %v252 = vmul.f32 %v251, 0.001
          %v253 = vld [vmem:[#allocation2 + $0x1] sm:$0x1]
          %v254 = vmul.f32 %v253, 0.001
          %v255 = vmul.f32 %v252, %v252
          %v256 = vsub.f32 %v254, %v255
          %v257 = vmax.f32 %v256, 0.0
          %v258 = vld [vmem:[%s2] sm:$0x1]
          %v259 = vadd.f32 %v257, 1e-05
          %v260 = vrsqrt.pop %v259
          %v261 = vmul.f32 %v260, %v259
          %v262 = vmul.f32 %v261, %v260
          %v263 = vmul.f32 0.5, %v262
          %v264 = vsub.f32 1.5, %v263
          %v265 = vmul.f32 %v260, %v264
          %vm266 = vweird.f32 %v259
          %vm267 = vweird.f32 %v260
          %vm268 = vmor %vm266, %vm267
          %v269 = vsel %vm268, %v260, %v265
          %v270 = vmul.f32 %v258, %v269
          %271 = vst [vmem:[#allocation4] sm:$0x1] %v270
          %v272 = vld [vmem:[%s2 + $0x1] sm:$0x1]
          %v273 = vmul.f32 %v252, %v270
          %v274 = vsub.f32 %v272, %v273
          %275 = vst [vmem:[#allocation4 + $0x1] sm:$0x1] %v274
          %276 = vst [vmem:[#allocation3] sm:$0x3] 0.0
        $region48: #{tpu_custom_call.1} parent=39 // pred_fallthru
          _
        %p277 = scmp.eq.s32.totalorder %s23, 2
        %p278 = pnand %p277, %p240
        %p279 = pneg %p278
        // Predicated region
        $region49: #{tpu_custom_call.1} parent=39 // pred_check
          _
        $region50: #{tpu_custom_call.1} parent=39 // pred_check_branch
          %281 = sbr.rel (%p278) target = $region52
        $region51: #{tpu_custom_call.1} parent=39 // pred_region
          %v282 = vld [vmem:[#allocation3] sm:$0x1]
          %v283 = vmul.f32 %v282, 0.001
          %v284 = vld [vmem:[#allocation3 + $0x1] sm:$0x1]
          %v285 = vmul.f32 %v284, 0.001
          %v286 = vmul.f32 %v283, %v283
          %v287 = vsub.f32 %v285, %v286
          %v288 = vmax.f32 %v287, 0.0
          %v289 = vld [vmem:[%s4] sm:$0x1]
          %v290 = vadd.f32 %v288, 1e-05
          %v291 = vrsqrt.pop %v290
          %v292 = vmul.f32 %v291, %v290
          %v293 = vmul.f32 %v292, %v291
          %v294 = vmul.f32 0.5, %v293
          %v295 = vsub.f32 1.5, %v294
          %v296 = vmul.f32 %v291, %v295
          %vm297 = vweird.f32 %v290
          %vm298 = vweird.f32 %v291
          %vm299 = vmor %vm297, %vm298
          %v300 = vsel %vm299, %v291, %v296
          %v301 = vmul.f32 %v289, %v300
          %302 = vst [vmem:[#allocation5] sm:$0x1] %v301
          %v303 = vld [vmem:[%s4 + $0x1] sm:$0x1]
          %v304 = vmul.f32 %v283, %v301
          %v305 = vsub.f32 %v303, %v304
          %306 = vst [vmem:[#allocation5 + $0x1] sm:$0x1] %v305
        $region52: #{tpu_custom_call.1} parent=39 // pred_fallthru
          _
        %s307 = smul.u32 %s24, 256
        %v308 = vlaneseq
        %v309 = vshrl.u32 %v308, 7
        %v310 = vadd.s32 %v309, 8
        %v311 = vadd.s32 %v309, 16
        %v312 = vadd.s32 %v309, 24
        %v313 = vadd.s32 %v309, 32
        %v314 = vadd.s32 %v309, 40
        %v315 = vadd.s32 %v309, 48
        %v316 = vadd.s32 %v309, 56
        %v317 = vadd.s32 %v309, 64
        %v318 = vadd.s32 %v309, 72
        %v319 = vadd.s32 %v309, 80
        %v320 = vadd.s32 %v309, 88
        %v321 = vadd.s32 %v309, 96
        %v322 = vadd.s32 %v309, 104
        %v323 = vadd.s32 %v309, 112
        %v324 = vadd.s32 %v309, 120
        %v325 = vadd.s32 %v309, 128
        %v326 = vadd.s32 %v309, 136
        %v327 = vadd.s32 %v309, 144
        %v328 = vadd.s32 %v309, 152
        %v329 = vadd.s32 %v309, 160
        %v330 = vadd.s32 %v309, 168
        %v331 = vadd.s32 %v309, 176
        %v332 = vadd.s32 %v309, 184
        %v333 = vadd.s32 %v309, 192
        %v334 = vadd.s32 %v309, 200
        %v335 = vadd.s32 %v309, 208
        %v336 = vadd.s32 %v309, 216
        %v337 = vadd.s32 %v309, 224
        %v338 = vadd.s32 %v309, 232
        %v339 = vadd.s32 %v309, 240
        %v340 = vadd.s32 %v309, 248
        %v341 = vstv %s307
        %v342 = vadd.s32 %v341, %v309
        %v343 = vadd.s32 %v341, %v310
        %v344 = vadd.s32 %v341, %v311
        %v345 = vadd.s32 %v341, %v312
        %v346 = vadd.s32 %v341, %v313
        %v347 = vadd.s32 %v341, %v314
        %v348 = vadd.s32 %v341, %v315
        %v349 = vadd.s32 %v341, %v316
        %v350 = vadd.s32 %v341, %v317
        %v351 = vadd.s32 %v341, %v318
        %v352 = vadd.s32 %v341, %v319
        %v353 = vadd.s32 %v341, %v320
        %v354 = vadd.s32 %v341, %v321
        %v355 = vadd.s32 %v341, %v322
        %v356 = vadd.s32 %v341, %v323
        %v357 = vadd.s32 %v341, %v324
        %v358 = vadd.s32 %v341, %v325
        %v359 = vadd.s32 %v341, %v326
        %v360 = vadd.s32 %v341, %v327
        %v361 = vadd.s32 %v341, %v328
        %v362 = vadd.s32 %v341, %v329
        %v363 = vadd.s32 %v341, %v330
        %v364 = vadd.s32 %v341, %v331
        %v365 = vadd.s32 %v341, %v332
        %v366 = vadd.s32 %v341, %v333
        %v367 = vadd.s32 %v341, %v334
        %v368 = vadd.s32 %v341, %v335
        %v369 = vadd.s32 %v341, %v336
        %v370 = vadd.s32 %v341, %v337
        %v371 = vadd.s32 %v341, %v338
        %v372 = vadd.s32 %v341, %v339
        %v373 = vadd.s32 %v341, %v340
        %vm374 = vcmp.lt.s32.totalorder %v342, 1000
        %vm375 = vcmp.lt.s32.totalorder %v343, 1000
        %vm376 = vcmp.lt.s32.totalorder %v344, 1000
        %vm377 = vcmp.lt.s32.totalorder %v345, 1000
        %vm378 = vcmp.lt.s32.totalorder %v346, 1000
        %vm379 = vcmp.lt.s32.totalorder %v347, 1000
        %vm380 = vcmp.lt.s32.totalorder %v348, 1000
        %vm381 = vcmp.lt.s32.totalorder %v349, 1000
        %vm382 = vcmp.lt.s32.totalorder %v350, 1000
        %vm383 = vcmp.lt.s32.totalorder %v351, 1000
        %vm384 = vcmp.lt.s32.totalorder %v352, 1000
        %vm385 = vcmp.lt.s32.totalorder %v353, 1000
        %vm386 = vcmp.lt.s32.totalorder %v354, 1000
        %vm387 = vcmp.lt.s32.totalorder %v355, 1000
        %vm388 = vcmp.lt.s32.totalorder %v356, 1000
        %vm389 = vcmp.lt.s32.totalorder %v357, 1000
        %vm390 = vcmp.lt.s32.totalorder %v358, 1000
        %vm391 = vcmp.lt.s32.totalorder %v359, 1000
        %vm392 = vcmp.lt.s32.totalorder %v360, 1000
        %vm393 = vcmp.lt.s32.totalorder %v361, 1000
        %vm394 = vcmp.lt.s32.totalorder %v362, 1000
        %vm395 = vcmp.lt.s32.totalorder %v363, 1000
        %vm396 = vcmp.lt.s32.totalorder %v364, 1000
        %vm397 = vcmp.lt.s32.totalorder %v365, 1000
        %vm398 = vcmp.lt.s32.totalorder %v366, 1000
        %vm399 = vcmp.lt.s32.totalorder %v367, 1000
        %vm400 = vcmp.lt.s32.totalorder %v368, 1000
        %vm401 = vcmp.lt.s32.totalorder %v369, 1000
        %vm402 = vcmp.lt.s32.totalorder %v370, 1000
        %vm403 = vcmp.lt.s32.totalorder %v371, 1000
        %vm404 = vcmp.lt.s32.totalorder %v372, 1000
        %vm405 = vcmp.lt.s32.totalorder %v373, 1000
        %v406 = vsel %vm374, 1.0, 0.0
        %v407 = vsel %vm375, 1.0, 0.0
        %v408 = vsel %vm376, 1.0, 0.0
        %v409 = vsel %vm377, 1.0, 0.0
        %v410 = vsel %vm378, 1.0, 0.0
        %v411 = vsel %vm379, 1.0, 0.0
        %v412 = vsel %vm380, 1.0, 0.0
        %v413 = vsel %vm381, 1.0, 0.0
        %v414 = vsel %vm382, 1.0, 0.0
        %v415 = vsel %vm383, 1.0, 0.0
        %v416 = vsel %vm384, 1.0, 0.0
        %v417 = vsel %vm385, 1.0, 0.0
        %v418 = vsel %vm386, 1.0, 0.0
        %v419 = vsel %vm387, 1.0, 0.0
        %v420 = vsel %vm388, 1.0, 0.0
        %v421 = vsel %vm389, 1.0, 0.0
        %v422 = vsel %vm390, 1.0, 0.0
        %v423 = vsel %vm391, 1.0, 0.0
        %v424 = vsel %vm392, 1.0, 0.0
        %v425 = vsel %vm393, 1.0, 0.0
        %v426 = vsel %vm394, 1.0, 0.0
        %v427 = vsel %vm395, 1.0, 0.0
        %v428 = vsel %vm396, 1.0, 0.0
        %v429 = vsel %vm397, 1.0, 0.0
        %v430 = vsel %vm398, 1.0, 0.0
        %v431 = vsel %vm399, 1.0, 0.0
        %v432 = vsel %vm400, 1.0, 0.0
        %v433 = vsel %vm401, 1.0, 0.0
        %v434 = vsel %vm402, 1.0, 0.0
        %v435 = vsel %vm403, 1.0, 0.0
        %v436 = vsel %vm404, 1.0, 0.0
        %v437 = vsel %vm405, 1.0, 0.0
        %v438 = vld [vmem:[%s235] sm:$0xff]
        %v439 = vld [vmem:[%s235 + $0x8] sm:$0xff]
        %v440 = vld [vmem:[%s235 + $0x10] sm:$0xff]
        %v441 = vld [vmem:[%s235 + $0x18] sm:$0xff]
        %v442 = vld [vmem:[%s235 + $0x20] sm:$0xff]
        %v443 = vld [vmem:[%s235 + $0x28] sm:$0xff]
        %v444 = vld [vmem:[%s235 + $0x30] sm:$0xff]
        %v445 = vld [vmem:[%s235 + $0x38] sm:$0xff]
        %v446 = vld [vmem:[%s235 + $0x40] sm:$0xff]
        %v447 = vld [vmem:[%s235 + $0x48] sm:$0xff]
        %v448 = vld [vmem:[%s235 + $0x50] sm:$0xff]
        %v449 = vld [vmem:[%s235 + $0x58] sm:$0xff]
        %v450 = vld [vmem:[%s235 + $0x60] sm:$0xff]
        %v451 = vld [vmem:[%s235 + $0x68] sm:$0xff]
        %v452 = vld [vmem:[%s235 + $0x70] sm:$0xff]
        %v453 = vld [vmem:[%s235 + $0x78] sm:$0xff]
        %v454 = vld [vmem:[%s235 + $0x80] sm:$0xff]
        %v455 = vld [vmem:[%s235 + $0x88] sm:$0xff]
        %v456 = vld [vmem:[%s235 + $0x90] sm:$0xff]
        %v457 = vld [vmem:[%s235 + $0x98] sm:$0xff]
        %v458 = vld [vmem:[%s235 + $0xa0] sm:$0xff]
        %v459 = vld [vmem:[%s235 + $0xa8] sm:$0xff]
        %v460 = vld [vmem:[%s235 + $0xb0] sm:$0xff]
        %v461 = vld [vmem:[%s235 + $0xb8] sm:$0xff]
        %v462 = vld [vmem:[%s235 + $0xc0] sm:$0xff]
        %v463 = vld [vmem:[%s235 + $0xc8] sm:$0xff]
        %v464 = vld [vmem:[%s235 + $0xd0] sm:$0xff]
        %v465 = vld [vmem:[%s235 + $0xd8] sm:$0xff]
        %v466 = vld [vmem:[%s235 + $0xe0] sm:$0xff]
        %v467 = vld [vmem:[%s235 + $0xe8] sm:$0xff]
        %v468 = vld [vmem:[%s235 + $0xf0] sm:$0xff]
        %v469 = vld [vmem:[%s235 + $0xf8] sm:$0xff]
        %v470 = vpack.c.bf16 %v439, %v438
        %v471 = vpack.c.bf16 %v441, %v440
        %v472 = vpack.c.bf16 %v443, %v442
        %v473 = vpack.c.bf16 %v445, %v444
        %v474 = vpack.c.bf16 %v447, %v446
        %v475 = vpack.c.bf16 %v449, %v448
        %v476 = vpack.c.bf16 %v451, %v450
        %v477 = vpack.c.bf16 %v453, %v452
        %v478 = vpack.c.bf16 %v455, %v454
        %v479 = vpack.c.bf16 %v457, %v456
        %v480 = vpack.c.bf16 %v459, %v458
        %v481 = vpack.c.bf16 %v461, %v460
        %v482 = vpack.c.bf16 %v463, %v462
        %v483 = vpack.c.bf16 %v465, %v464
        %v484 = vpack.c.bf16 %v467, %v466
        %v485 = vpack.c.bf16 %v469, %v468
        %v486 = vld [vmem:[%s1] sm:$0xf]
        %v487 = vld [vmem:[%s1 + $0x4] sm:$0xf]
        %v488 = vld [vmem:[%s1 + $0x8] sm:$0xf]
        %v489 = vld [vmem:[%s1 + $0xc] sm:$0xf]
        %v490 = vld [vmem:[%s1 + $0x10] sm:$0xf]
        %v491 = vld [vmem:[%s1 + $0x14] sm:$0xf]
        %v492 = vld [vmem:[%s1 + $0x18] sm:$0xf]
        %v493 = vld [vmem:[%s1 + $0x1c] sm:$0xf]
        %v502 = vunpack.c.l.b16 %v486
        %v503 = vunpack.c.l.b16 %v487
        %v504 = vunpack.c.l.b16 %v488
        %v505 = vunpack.c.l.b16 %v489
        %v506 = vunpack.c.l.b16 %v490
        %v507 = vunpack.c.l.b16 %v491
        %v508 = vunpack.c.l.b16 %v492
        %v509 = vunpack.c.l.b16 %v493
        %v510 = vpack.c.b16 %v503, %v502
        %v511 = vpack.c.b16 %v505, %v504
        %v512 = vpack.c.b16 %v507, %v506
        %v513 = vpack.c.b16 %v509, %v508
        %vm518 = vcmask 523264
        %v520 = vsel %vm518, %v470, 0
        %v523 = vsel %vm518, %v471, 0
        %v526 = vsel %vm518, %v472, 0
        %v529 = vsel %vm518, %v473, 0
        %v532 = vsel %vm518, %v474, 0
        %v535 = vsel %vm518, %v475, 0
        %v538 = vsel %vm518, %v476, 0
        %v541 = vsel %vm518, %v477, 0
        %v544 = vsel %vm518, %v478, 0
        %v547 = vsel %vm518, %v479, 0
        %v550 = vsel %vm518, %v480, 0
        %v553 = vsel %vm518, %v481, 0
        %v556 = vsel %vm518, %v482, 0
        %v559 = vsel %vm518, %v483, 0
        %v562 = vsel %vm518, %v484, 0
        %v565 = vsel %vm518, %v485, 0
        %567 = vmatpush.bf16.msra.mxu0 0
        %568 = vmatpush.bf16.msra.mxu0 0
        %569 = vmatpush.bf16.msra.mxu0 0
        %570 = vmatpush.bf16.msra.mxu0 0
        %571 = vmatpush.bf16.msra.mxu0 %v513
        %572 = vmatpush.bf16.msra.mxu0 %v512
        %573 = vmatpush.bf16.msra.mxu0 %v511
        %574 = vmatpush.bf16.msra.mxu0 %v510
        %575 = vmatmul.bf16.gmra.mxu0 %v520
        %v576 = vpop.f32.mrf.mxu0
        %v577 = vadd.f32 0.0, %v576
        %v578 = vpop.f32.mrf.mxu0
        %v579 = vadd.f32 0.0, %v578
        %580 = vmatmul.bf16.gmra.mxu0 %v523
        %v581 = vpop.f32.mrf.mxu0
        %v582 = vadd.f32 0.0, %v581
        %v583 = vpop.f32.mrf.mxu0
        %v584 = vadd.f32 0.0, %v583
        %585 = vmatmul.bf16.gmra.mxu0 %v526
        %v586 = vpop.f32.mrf.mxu0
        %v587 = vadd.f32 0.0, %v586
        %v588 = vpop.f32.mrf.mxu0
        %v589 = vadd.f32 0.0, %v588
        %590 = vmatmul.bf16.gmra.mxu0 %v529
        %v591 = vpop.f32.mrf.mxu0
        %v592 = vadd.f32 0.0, %v591
        %v593 = vpop.f32.mrf.mxu0
        %v594 = vadd.f32 0.0, %v593
        %595 = vmatmul.bf16.gmra.mxu0 %v532
        %v596 = vpop.f32.mrf.mxu0
        %v597 = vadd.f32 0.0, %v596
        %v598 = vpop.f32.mrf.mxu0
        %v599 = vadd.f32 0.0, %v598
        %600 = vmatmul.bf16.gmra.mxu0 %v535
        %v601 = vpop.f32.mrf.mxu0
        %v602 = vadd.f32 0.0, %v601
        %v603 = vpop.f32.mrf.mxu0
        %v604 = vadd.f32 0.0, %v603
        %605 = vmatmul.bf16.gmra.mxu0 %v538
        %v606 = vpop.f32.mrf.mxu0
        %v607 = vadd.f32 0.0, %v606
        %v608 = vpop.f32.mrf.mxu0
        %v609 = vadd.f32 0.0, %v608
        %610 = vmatmul.bf16.gmra.mxu0 %v541
        %v611 = vpop.f32.mrf.mxu0
        %v612 = vadd.f32 0.0, %v611
        %v613 = vpop.f32.mrf.mxu0
        %v614 = vadd.f32 0.0, %v613
        %615 = vmatmul.bf16.gmra.mxu0 %v544
        %v616 = vpop.f32.mrf.mxu0
        %v617 = vadd.f32 0.0, %v616
        %v618 = vpop.f32.mrf.mxu0
        %v619 = vadd.f32 0.0, %v618
        %620 = vmatmul.bf16.gmra.mxu0 %v547
        %v621 = vpop.f32.mrf.mxu0
        %v622 = vadd.f32 0.0, %v621
        %v623 = vpop.f32.mrf.mxu0
        %v624 = vadd.f32 0.0, %v623
        %625 = vmatmul.bf16.gmra.mxu0 %v550
        %v626 = vpop.f32.mrf.mxu0
        %v627 = vadd.f32 0.0, %v626
        %v628 = vpop.f32.mrf.mxu0
        %v629 = vadd.f32 0.0, %v628
        %630 = vmatmul.bf16.gmra.mxu0 %v553
        %v631 = vpop.f32.mrf.mxu0
        %v632 = vadd.f32 0.0, %v631
        %v633 = vpop.f32.mrf.mxu0
        %v634 = vadd.f32 0.0, %v633
        %635 = vmatmul.bf16.gmra.mxu0 %v556
        %v636 = vpop.f32.mrf.mxu0
        %v637 = vadd.f32 0.0, %v636
        %v638 = vpop.f32.mrf.mxu0
        %v639 = vadd.f32 0.0, %v638
        %640 = vmatmul.bf16.gmra.mxu0 %v559
        %v641 = vpop.f32.mrf.mxu0
        %v642 = vadd.f32 0.0, %v641
        %v643 = vpop.f32.mrf.mxu0
        %v644 = vadd.f32 0.0, %v643
        %645 = vmatmul.bf16.gmra.mxu0 %v562
        %v646 = vpop.f32.mrf.mxu0
        %v647 = vadd.f32 0.0, %v646
        %v648 = vpop.f32.mrf.mxu0
        %v649 = vadd.f32 0.0, %v648
        %650 = vmatmul.bf16.gmra.mxu0 %v565
        %v651 = vpop.f32.mrf.mxu0
        %v652 = vadd.f32 0.0, %v651
        %v653 = vpop.f32.mrf.mxu0
        %v654 = vadd.f32 0.0, %v653
        %655 = vdwg.mxu0
        // Predicated region
        $region53: #{tpu_custom_call.1} parent=39 // pred_check
          %p656 = pneg %p239
        $region54: #{tpu_custom_call.1} parent=39 // pred_check_branch
          %658 = sbr.rel (%p656) target = $region56
        $region55: #{tpu_custom_call.1} parent=39 // pred_region
          %v659 = vmul.f32 %v577, %v406
          %v660 = vmul.f32 %v579, %v407
          %v661 = vmul.f32 %v582, %v408
          %v662 = vmul.f32 %v584, %v409
          %v663 = vmul.f32 %v587, %v410
          %v664 = vmul.f32 %v589, %v411
          %v665 = vmul.f32 %v592, %v412
          %v666 = vmul.f32 %v594, %v413
          %v667 = vmul.f32 %v597, %v414
          %v668 = vmul.f32 %v599, %v415
          %v669 = vmul.f32 %v602, %v416
          %v670 = vmul.f32 %v604, %v417
          %v671 = vmul.f32 %v607, %v418
          %v672 = vmul.f32 %v609, %v419
          %v673 = vmul.f32 %v612, %v420
          %v674 = vmul.f32 %v614, %v421
          %v675 = vmul.f32 %v617, %v422
          %v676 = vmul.f32 %v619, %v423
          %v677 = vmul.f32 %v622, %v424
          %v678 = vmul.f32 %v624, %v425
          %v679 = vmul.f32 %v627, %v426
          %v680 = vmul.f32 %v629, %v427
          %v681 = vmul.f32 %v632, %v428
          %v682 = vmul.f32 %v634, %v429
          %v683 = vmul.f32 %v637, %v430
          %v684 = vmul.f32 %v639, %v431
          %v685 = vmul.f32 %v642, %v432
          %v686 = vmul.f32 %v644, %v433
          %v687 = vmul.f32 %v647, %v434
          %v688 = vmul.f32 %v649, %v435
          %v689 = vmul.f32 %v652, %v436
          %v690 = vmul.f32 %v654, %v437
          %v691 = vld [vmem:[#allocation2] sm:$0x1]
          %v692 = vadd.f32 %v659, %v660
          %v693 = vadd.f32 %v692, %v661
          %v694 = vadd.f32 %v693, %v662
          %v695 = vadd.f32 %v694, %v663
          %v696 = vadd.f32 %v695, %v664
          %v697 = vadd.f32 %v696, %v665
          %v698 = vadd.f32 %v697, %v666
          %v699 = vadd.f32 %v698, %v667
          %v700 = vadd.f32 %v699, %v668
          %v701 = vadd.f32 %v700, %v669
          %v702 = vadd.f32 %v701, %v670
          %v703 = vadd.f32 %v702, %v671
          %v704 = vadd.f32 %v703, %v672
          %v705 = vadd.f32 %v704, %v673
          %v706 = vadd.f32 %v705, %v674
          %v707 = vadd.f32 %v706, %v675
          %v708 = vadd.f32 %v707, %v676
          %v709 = vadd.f32 %v708, %v677
          %v710 = vadd.f32 %v709, %v678
          %v711 = vadd.f32 %v710, %v679
          %v712 = vadd.f32 %v711, %v680
          %v713 = vadd.f32 %v712, %v681
          %v714 = vadd.f32 %v713, %v682
          %v715 = vadd.f32 %v714, %v683
          %v716 = vadd.f32 %v715, %v684
          %v717 = vadd.f32 %v716, %v685
          %v718 = vadd.f32 %v717, %v686
          %v719 = vadd.f32 %v718, %v687
          %v720 = vadd.f32 %v719, %v688
          %v721 = vadd.f32 %v720, %v689
          %v722 = vadd.f32 %v721, %v690
          %v723 = vrot.slane %v722, 4
          %v724 = vadd.f32 %v722, %v723
          %v725 = vrot.slane %v724, 2
          %v726 = vadd.f32 %v724, %v725
          %v727 = vrot.slane %v726, 1
          %v728 = vadd.f32 %v726, %v727
          %v729 = vadd.f32 %v691, %v728
          %730 = vst [vmem:[#allocation2] sm:$0x1] %v729
          %v731 = vld [vmem:[#allocation2 + $0x1] sm:$0x1]
          %v732 = vmul.f32 %v659, %v577
          %v733 = vmul.f32 %v660, %v579
          %v734 = vmul.f32 %v661, %v582
          %v735 = vmul.f32 %v662, %v584
          %v736 = vmul.f32 %v663, %v587
          %v737 = vmul.f32 %v664, %v589
          %v738 = vmul.f32 %v665, %v592
          %v739 = vmul.f32 %v666, %v594
          %v740 = vmul.f32 %v667, %v597
          %v741 = vmul.f32 %v668, %v599
          %v742 = vmul.f32 %v669, %v602
          %v743 = vmul.f32 %v670, %v604
          %v744 = vmul.f32 %v671, %v607
          %v745 = vmul.f32 %v672, %v609
          %v746 = vmul.f32 %v673, %v612
          %v747 = vmul.f32 %v674, %v614
          %v748 = vmul.f32 %v675, %v617
          %v749 = vmul.f32 %v676, %v619
          %v750 = vmul.f32 %v677, %v622
          %v751 = vmul.f32 %v678, %v624
          %v752 = vmul.f32 %v679, %v627
          %v753 = vmul.f32 %v680, %v629
          %v754 = vmul.f32 %v681, %v632
          %v755 = vmul.f32 %v682, %v634
          %v756 = vmul.f32 %v683, %v637
          %v757 = vmul.f32 %v684, %v639
          %v758 = vmul.f32 %v685, %v642
          %v759 = vmul.f32 %v686, %v644
          %v760 = vmul.f32 %v687, %v647
          %v761 = vmul.f32 %v688, %v649
          %v762 = vmul.f32 %v689, %v652
          %v763 = vmul.f32 %v690, %v654
          %v764 = vadd.f32 %v732, %v733
          %v765 = vadd.f32 %v764, %v734
          %v766 = vadd.f32 %v765, %v735
          %v767 = vadd.f32 %v766, %v736
          %v768 = vadd.f32 %v767, %v737
          %v769 = vadd.f32 %v768, %v738
          %v770 = vadd.f32 %v769, %v739
          %v771 = vadd.f32 %v770, %v740
          %v772 = vadd.f32 %v771, %v741
          %v773 = vadd.f32 %v772, %v742
          %v774 = vadd.f32 %v773, %v743
          %v775 = vadd.f32 %v774, %v744
          %v776 = vadd.f32 %v775, %v745
          %v777 = vadd.f32 %v776, %v746
          %v778 = vadd.f32 %v777, %v747
          %v779 = vadd.f32 %v778, %v748
          %v780 = vadd.f32 %v779, %v749
          %v781 = vadd.f32 %v780, %v750
          %v782 = vadd.f32 %v781, %v751
          %v783 = vadd.f32 %v782, %v752
          %v784 = vadd.f32 %v783, %v753
          %v785 = vadd.f32 %v784, %v754
          %v786 = vadd.f32 %v785, %v755
          %v787 = vadd.f32 %v786, %v756
          %v788 = vadd.f32 %v787, %v757
          %v789 = vadd.f32 %v788, %v758
          %v790 = vadd.f32 %v789, %v759
          %v791 = vadd.f32 %v790, %v760
          %v792 = vadd.f32 %v791, %v761
          %v793 = vadd.f32 %v792, %v762
          %v794 = vadd.f32 %v793, %v763
          %v795 = vrot.slane %v794, 4
          %v796 = vadd.f32 %v794, %v795
          %v797 = vrot.slane %v796, 2
          %v798 = vadd.f32 %v796, %v797
          %v799 = vrot.slane %v798, 1
          %v800 = vadd.f32 %v798, %v799
          %v801 = vadd.f32 %v731, %v800
          %802 = vst [vmem:[#allocation2 + $0x1] sm:$0x1] %v801
        $region56: #{tpu_custom_call.1} parent=39 // pred_fallthru
          _
        %p803 = scmp.ge.s32.totalorder %s23, 1
        // Predicated region
        $region57: #{tpu_custom_call.1} parent=39 // pred_check
          %p804 = pneg %p803
        $region58: #{tpu_custom_call.1} parent=39 // pred_check_branch
          %806 = sbr.rel (%p804) target = $region60
        $region59: #{tpu_custom_call.1} parent=39 // pred_region
          %v807 = vld [vmem:[#allocation4] sm:$0x1]
          %v808 = vperm.slane %v807, 0
          %v809 = vmul.f32 %v577, %v808
          %v810 = vmul.f32 %v579, %v808
          %v811 = vmul.f32 %v582, %v808
          %v812 = vmul.f32 %v584, %v808
          %v813 = vmul.f32 %v587, %v808
          %v814 = vmul.f32 %v589, %v808
          %v815 = vmul.f32 %v592, %v808
          %v816 = vmul.f32 %v594, %v808
          %v817 = vmul.f32 %v597, %v808
          %v818 = vmul.f32 %v599, %v808
          %v819 = vmul.f32 %v602, %v808
          %v820 = vmul.f32 %v604, %v808
          %v821 = vmul.f32 %v607, %v808
          %v822 = vmul.f32 %v609, %v808
          %v823 = vmul.f32 %v612, %v808
          %v824 = vmul.f32 %v614, %v808
          %v825 = vmul.f32 %v617, %v808
          %v826 = vmul.f32 %v619, %v808
          %v827 = vmul.f32 %v622, %v808
          %v828 = vmul.f32 %v624, %v808
          %v829 = vmul.f32 %v627, %v808
          %v830 = vmul.f32 %v629, %v808
          %v831 = vmul.f32 %v632, %v808
          %v832 = vmul.f32 %v634, %v808
          %v833 = vmul.f32 %v637, %v808
          %v834 = vmul.f32 %v639, %v808
          %v835 = vmul.f32 %v642, %v808
          %v836 = vmul.f32 %v644, %v808
          %v837 = vmul.f32 %v647, %v808
          %v838 = vmul.f32 %v649, %v808
          %v839 = vmul.f32 %v652, %v808
          %v840 = vmul.f32 %v654, %v808
          %v841 = vld [vmem:[#allocation4 + $0x1] sm:$0x1]
          %v842 = vperm.slane %v841, 0
          %v843 = vadd.f32 %v809, %v842
          %v844 = vadd.f32 %v810, %v842
          %v845 = vadd.f32 %v811, %v842
          %v846 = vadd.f32 %v812, %v842
          %v847 = vadd.f32 %v813, %v842
          %v848 = vadd.f32 %v814, %v842
          %v849 = vadd.f32 %v815, %v842
          %v850 = vadd.f32 %v816, %v842
          %v851 = vadd.f32 %v817, %v842
          %v852 = vadd.f32 %v818, %v842
          %v853 = vadd.f32 %v819, %v842
          %v854 = vadd.f32 %v820, %v842
          %v855 = vadd.f32 %v821, %v842
          %v856 = vadd.f32 %v822, %v842
          %v857 = vadd.f32 %v823, %v842
          %v858 = vadd.f32 %v824, %v842
          %v859 = vadd.f32 %v825, %v842
          %v860 = vadd.f32 %v826, %v842
          %v861 = vadd.f32 %v827, %v842
          %v862 = vadd.f32 %v828, %v842
          %v863 = vadd.f32 %v829, %v842
          %v864 = vadd.f32 %v830, %v842
          %v865 = vadd.f32 %v831, %v842
          %v866 = vadd.f32 %v832, %v842
          %v867 = vadd.f32 %v833, %v842
          %v868 = vadd.f32 %v834, %v842
          %v869 = vadd.f32 %v835, %v842
          %v870 = vadd.f32 %v836, %v842
          %v871 = vadd.f32 %v837, %v842
          %v872 = vadd.f32 %v838, %v842
          %v873 = vadd.f32 %v839, %v842
          %v874 = vadd.f32 %v840, %v842
          %v875 = vmax.f32 %v843, 0.0
          %v876 = vmax.f32 %v844, 0.0
          %v877 = vmax.f32 %v845, 0.0
          %v878 = vmax.f32 %v846, 0.0
          %v879 = vmax.f32 %v847, 0.0
          %v880 = vmax.f32 %v848, 0.0
          %v881 = vmax.f32 %v849, 0.0
          %v882 = vmax.f32 %v850, 0.0
          %v883 = vmax.f32 %v851, 0.0
          %v884 = vmax.f32 %v852, 0.0
          %v885 = vmax.f32 %v853, 0.0
          %v886 = vmax.f32 %v854, 0.0
          %v887 = vmax.f32 %v855, 0.0
          %v888 = vmax.f32 %v856, 0.0
          %v889 = vmax.f32 %v857, 0.0
          %v890 = vmax.f32 %v858, 0.0
          %v891 = vmax.f32 %v859, 0.0
          %v892 = vmax.f32 %v860, 0.0
          %v893 = vmax.f32 %v861, 0.0
          %v894 = vmax.f32 %v862, 0.0
          %v895 = vmax.f32 %v863, 0.0
          %v896 = vmax.f32 %v864, 0.0
          %v897 = vmax.f32 %v865, 0.0
          %v898 = vmax.f32 %v866, 0.0
          %v899 = vmax.f32 %v867, 0.0
          %v900 = vmax.f32 %v868, 0.0
          %v901 = vmax.f32 %v869, 0.0
          %v902 = vmax.f32 %v870, 0.0
          %v903 = vmax.f32 %v871, 0.0
          %v904 = vmax.f32 %v872, 0.0
          %v905 = vmax.f32 %v873, 0.0
          %v906 = vmax.f32 %v874, 0.0
          %v907 = vpack.c.bf16 %v876, %v875
          %v908 = vpack.c.bf16 %v878, %v877
          %v909 = vpack.c.bf16 %v880, %v879
          %v910 = vpack.c.bf16 %v882, %v881
          %v911 = vpack.c.bf16 %v884, %v883
          %v912 = vpack.c.bf16 %v886, %v885
          %v913 = vpack.c.bf16 %v888, %v887
          %v914 = vpack.c.bf16 %v890, %v889
          %v915 = vpack.c.bf16 %v892, %v891
          %v916 = vpack.c.bf16 %v894, %v893
          %v917 = vpack.c.bf16 %v896, %v895
          %v918 = vpack.c.bf16 %v898, %v897
          %v919 = vpack.c.bf16 %v900, %v899
          %v920 = vpack.c.bf16 %v902, %v901
          %v921 = vpack.c.bf16 %v904, %v903
          %v922 = vpack.c.bf16 %v906, %v905
          %v923 = vld [vmem:[%s3] sm:$0xf]
          %v924 = vld [vmem:[%s3 + $0x4] sm:$0xf]
          %v925 = vld [vmem:[%s3 + $0x8] sm:$0xf]
          %v926 = vld [vmem:[%s3 + $0xc] sm:$0xf]
          %v927 = vld [vmem:[%s3 + $0x10] sm:$0xf]
          %v928 = vld [vmem:[%s3 + $0x14] sm:$0xf]
          %v929 = vld [vmem:[%s3 + $0x18] sm:$0xf]
          %v930 = vld [vmem:[%s3 + $0x1c] sm:$0xf]
          %v931 = vld [vmem:[%s3 + $0x20] sm:$0xf]
          %v932 = vld [vmem:[%s3 + $0x24] sm:$0xf]
          %v933 = vld [vmem:[%s3 + $0x28] sm:$0xf]
          %v934 = vld [vmem:[%s3 + $0x2c] sm:$0xf]
          %v935 = vld [vmem:[%s3 + $0x30] sm:$0xf]
          %v936 = vld [vmem:[%s3 + $0x34] sm:$0xf]
          %v937 = vld [vmem:[%s3 + $0x38] sm:$0xf]
          %v938 = vld [vmem:[%s3 + $0x3c] sm:$0xf]
          %v955 = vunpack.c.l.b16 %v923
          %v956 = vunpack.c.l.b16 %v924
          %v957 = vunpack.c.l.b16 %v925
          %v958 = vunpack.c.l.b16 %v926
          %v959 = vunpack.c.l.b16 %v927
          %v960 = vunpack.c.l.b16 %v928
          %v961 = vunpack.c.l.b16 %v929
          %v962 = vunpack.c.l.b16 %v930
          %v963 = vunpack.c.l.b16 %v931
          %v964 = vunpack.c.l.b16 %v932
          %v965 = vunpack.c.l.b16 %v933
          %v966 = vunpack.c.l.b16 %v934
          %v967 = vunpack.c.l.b16 %v935
          %v968 = vunpack.c.l.b16 %v936
          %v969 = vunpack.c.l.b16 %v937
          %v970 = vunpack.c.l.b16 %v938
          %v971 = vpack.c.b16 %v956, %v955
          %v972 = vpack.c.b16 %v958, %v957
          %v973 = vpack.c.b16 %v960, %v959
          %v974 = vpack.c.b16 %v962, %v961
          %v975 = vpack.c.b16 %v964, %v963
          %v976 = vpack.c.b16 %v966, %v965
          %v977 = vpack.c.b16 %v968, %v967
          %v978 = vpack.c.b16 %v970, %v969
          %987 = vmatpush.bf16.msra.mxu0 %v978
          %988 = vmatpush.bf16.msra.mxu0 %v977
          %989 = vmatpush.bf16.msra.mxu0 %v976
          %990 = vmatpush.bf16.msra.mxu0 %v975
          %991 = vmatpush.bf16.msra.mxu0 %v974
          %992 = vmatpush.bf16.msra.mxu0 %v973
          %993 = vmatpush.bf16.msra.mxu0 %v972
          %994 = vmatpush.bf16.msra.mxu0 %v971
          %995 = vmatmul.bf16.gmra.mxu0 %v907
          %v996 = vpop.f32.mrf.mxu0
          %v997 = vadd.f32 0.0, %v996
          %v998 = vpop.f32.mrf.mxu0
          %v999 = vadd.f32 0.0, %v998
          %1000 = vmatmul.bf16.gmra.mxu0 %v908
          %v1001 = vpop.f32.mrf.mxu0
          %v1002 = vadd.f32 0.0, %v1001
          %v1003 = vpop.f32.mrf.mxu0
          %v1004 = vadd.f32 0.0, %v1003
          %1005 = vmatmul.bf16.gmra.mxu0 %v909
          %v1006 = vpop.f32.mrf.mxu0
          %v1007 = vadd.f32 0.0, %v1006
          %v1008 = vpop.f32.mrf.mxu0
          %v1009 = vadd.f32 0.0, %v1008
          %1010 = vmatmul.bf16.gmra.mxu0 %v910
          %v1011 = vpop.f32.mrf.mxu0
          %v1012 = vadd.f32 0.0, %v1011
          %v1013 = vpop.f32.mrf.mxu0
          %v1014 = vadd.f32 0.0, %v1013
          %1015 = vmatmul.bf16.gmra.mxu0 %v911
          %v1016 = vpop.f32.mrf.mxu0
          %v1017 = vadd.f32 0.0, %v1016
          %v1018 = vpop.f32.mrf.mxu0
          %v1019 = vadd.f32 0.0, %v1018
          %1020 = vmatmul.bf16.gmra.mxu0 %v912
          %v1021 = vpop.f32.mrf.mxu0
          %v1022 = vadd.f32 0.0, %v1021
          %v1023 = vpop.f32.mrf.mxu0
          %v1024 = vadd.f32 0.0, %v1023
          %1025 = vmatmul.bf16.gmra.mxu0 %v913
          %v1026 = vpop.f32.mrf.mxu0
          %v1027 = vadd.f32 0.0, %v1026
          %v1028 = vpop.f32.mrf.mxu0
          %v1029 = vadd.f32 0.0, %v1028
          %1030 = vmatmul.bf16.gmra.mxu0 %v914
          %v1031 = vpop.f32.mrf.mxu0
          %v1032 = vadd.f32 0.0, %v1031
          %v1033 = vpop.f32.mrf.mxu0
          %v1034 = vadd.f32 0.0, %v1033
          %1035 = vmatmul.bf16.gmra.mxu0 %v915
          %v1036 = vpop.f32.mrf.mxu0
          %v1037 = vadd.f32 0.0, %v1036
          %v1038 = vpop.f32.mrf.mxu0
          %v1039 = vadd.f32 0.0, %v1038
          %1040 = vmatmul.bf16.gmra.mxu0 %v916
          %v1041 = vpop.f32.mrf.mxu0
          %v1042 = vadd.f32 0.0, %v1041
          %v1043 = vpop.f32.mrf.mxu0
          %v1044 = vadd.f32 0.0, %v1043
          %1045 = vmatmul.bf16.gmra.mxu0 %v917
          %v1046 = vpop.f32.mrf.mxu0
          %v1047 = vadd.f32 0.0, %v1046
          %v1048 = vpop.f32.mrf.mxu0
          %v1049 = vadd.f32 0.0, %v1048
          %1050 = vmatmul.bf16.gmra.mxu0 %v918
          %v1051 = vpop.f32.mrf.mxu0
          %v1052 = vadd.f32 0.0, %v1051
          %v1053 = vpop.f32.mrf.mxu0
          %v1054 = vadd.f32 0.0, %v1053
          %1055 = vmatmul.bf16.gmra.mxu0 %v919
          %v1056 = vpop.f32.mrf.mxu0
          %v1057 = vadd.f32 0.0, %v1056
          %v1058 = vpop.f32.mrf.mxu0
          %v1059 = vadd.f32 0.0, %v1058
          %1060 = vmatmul.bf16.gmra.mxu0 %v920
          %v1061 = vpop.f32.mrf.mxu0
          %v1062 = vadd.f32 0.0, %v1061
          %v1063 = vpop.f32.mrf.mxu0
          %v1064 = vadd.f32 0.0, %v1063
          %1065 = vmatmul.bf16.gmra.mxu0 %v921
          %v1066 = vpop.f32.mrf.mxu0
          %v1067 = vadd.f32 0.0, %v1066
          %v1068 = vpop.f32.mrf.mxu0
          %v1069 = vadd.f32 0.0, %v1068
          %1070 = vmatmul.bf16.gmra.mxu0 %v922
          %v1071 = vpop.f32.mrf.mxu0
          %v1072 = vadd.f32 0.0, %v1071
          %v1073 = vpop.f32.mrf.mxu0
          %v1074 = vadd.f32 0.0, %v1073
          %1075 = vdwg.mxu0
          // Predicated region
          $region61: #{tpu_custom_call.1} parent=59 // pred_check
            %p1076 = pneg %p246
          $region62: #{tpu_custom_call.1} parent=59 // pred_check_branch
            %1078 = sbr.rel (%p1076) target = $region64
          $region63: #{tpu_custom_call.1} parent=59 // pred_region
            %v1079 = vmul.f32 %v997, %v406
            %v1080 = vmul.f32 %v999, %v407
            %v1081 = vmul.f32 %v1002, %v408
            %v1082 = vmul.f32 %v1004, %v409
            %v1083 = vmul.f32 %v1007, %v410
            %v1084 = vmul.f32 %v1009, %v411
            %v1085 = vmul.f32 %v1012, %v412
            %v1086 = vmul.f32 %v1014, %v413
            %v1087 = vmul.f32 %v1017, %v414
            %v1088 = vmul.f32 %v1019, %v415
            %v1089 = vmul.f32 %v1022, %v416
            %v1090 = vmul.f32 %v1024, %v417
            %v1091 = vmul.f32 %v1027, %v418
            %v1092 = vmul.f32 %v1029, %v419
            %v1093 = vmul.f32 %v1032, %v420
            %v1094 = vmul.f32 %v1034, %v421
            %v1095 = vmul.f32 %v1037, %v422
            %v1096 = vmul.f32 %v1039, %v423
            %v1097 = vmul.f32 %v1042, %v424
            %v1098 = vmul.f32 %v1044, %v425
            %v1099 = vmul.f32 %v1047, %v426
            %v1100 = vmul.f32 %v1049, %v427
            %v1101 = vmul.f32 %v1052, %v428
            %v1102 = vmul.f32 %v1054, %v429
            %v1103 = vmul.f32 %v1057, %v430
            %v1104 = vmul.f32 %v1059, %v431
            %v1105 = vmul.f32 %v1062, %v432
            %v1106 = vmul.f32 %v1064, %v433
            %v1107 = vmul.f32 %v1067, %v434
            %v1108 = vmul.f32 %v1069, %v435
            %v1109 = vmul.f32 %v1072, %v436
            %v1110 = vmul.f32 %v1074, %v437
            %v1111 = vld [vmem:[#allocation3] sm:$0x1]
            %v1112 = vadd.f32 %v1079, %v1080
            %v1113 = vadd.f32 %v1112, %v1081
            %v1114 = vadd.f32 %v1113, %v1082
            %v1115 = vadd.f32 %v1114, %v1083
            %v1116 = vadd.f32 %v1115, %v1084
            %v1117 = vadd.f32 %v1116, %v1085
            %v1118 = vadd.f32 %v1117, %v1086
            %v1119 = vadd.f32 %v1118, %v1087
            %v1120 = vadd.f32 %v1119, %v1088
            %v1121 = vadd.f32 %v1120, %v1089
            %v1122 = vadd.f32 %v1121, %v1090
            %v1123 = vadd.f32 %v1122, %v1091
            %v1124 = vadd.f32 %v1123, %v1092
            %v1125 = vadd.f32 %v1124, %v1093
            %v1126 = vadd.f32 %v1125, %v1094
            %v1127 = vadd.f32 %v1126, %v1095
            %v1128 = vadd.f32 %v1127, %v1096
            %v1129 = vadd.f32 %v1128, %v1097
            %v1130 = vadd.f32 %v1129, %v1098
            %v1131 = vadd.f32 %v1130, %v1099
            %v1132 = vadd.f32 %v1131, %v1100
            %v1133 = vadd.f32 %v1132, %v1101
            %v1134 = vadd.f32 %v1133, %v1102
            %v1135 = vadd.f32 %v1134, %v1103
            %v1136 = vadd.f32 %v1135, %v1104
            %v1137 = vadd.f32 %v1136, %v1105
            %v1138 = vadd.f32 %v1137, %v1106
            %v1139 = vadd.f32 %v1138, %v1107
            %v1140 = vadd.f32 %v1139, %v1108
            %v1141 = vadd.f32 %v1140, %v1109
            %v1142 = vadd.f32 %v1141, %v1110
            %v1143 = vrot.slane %v1142, 4
            %v1144 = vadd.f32 %v1142, %v1143
            %v1145 = vrot.slane %v1144, 2
            %v1146 = vadd.f32 %v1144, %v1145
            %v1147 = vrot.slane %v1146, 1
            %v1148 = vadd.f32 %v1146, %v1147
            %v1149 = vadd.f32 %v1111, %v1148
            %1150 = vst [vmem:[#allocation3] sm:$0x1] %v1149
            %v1151 = vld [vmem:[#allocation3 + $0x1] sm:$0x1]
            %v1152 = vmul.f32 %v1079, %v997
            %v1153 = vmul.f32 %v1080, %v999
            %v1154 = vmul.f32 %v1081, %v1002
            %v1155 = vmul.f32 %v1082, %v1004
            %v1156 = vmul.f32 %v1083, %v1007
            %v1157 = vmul.f32 %v1084, %v1009
            %v1158 = vmul.f32 %v1085, %v1012
            %v1159 = vmul.f32 %v1086, %v1014
            %v1160 = vmul.f32 %v1087, %v1017
            %v1161 = vmul.f32 %v1088, %v1019
            %v1162 = vmul.f32 %v1089, %v1022
            %v1163 = vmul.f32 %v1090, %v1024
            %v1164 = vmul.f32 %v1091, %v1027
            %v1165 = vmul.f32 %v1092, %v1029
            %v1166 = vmul.f32 %v1093, %v1032
            %v1167 = vmul.f32 %v1094, %v1034
            %v1168 = vmul.f32 %v1095, %v1037
            %v1169 = vmul.f32 %v1096, %v1039
            %v1170 = vmul.f32 %v1097, %v1042
            %v1171 = vmul.f32 %v1098, %v1044
            %v1172 = vmul.f32 %v1099, %v1047
            %v1173 = vmul.f32 %v1100, %v1049
            %v1174 = vmul.f32 %v1101, %v1052
            %v1175 = vmul.f32 %v1102, %v1054
            %v1176 = vmul.f32 %v1103, %v1057
            %v1177 = vmul.f32 %v1104, %v1059
            %v1178 = vmul.f32 %v1105, %v1062
            %v1179 = vmul.f32 %v1106, %v1064
            %v1180 = vmul.f32 %v1107, %v1067
            %v1181 = vmul.f32 %v1108, %v1069
            %v1182 = vmul.f32 %v1109, %v1072
            %v1183 = vmul.f32 %v1110, %v1074
            %v1184 = vadd.f32 %v1152, %v1153
            %v1185 = vadd.f32 %v1184, %v1154
            %v1186 = vadd.f32 %v1185, %v1155
            %v1187 = vadd.f32 %v1186, %v1156
            %v1188 = vadd.f32 %v1187, %v1157
            %v1189 = vadd.f32 %v1188, %v1158
            %v1190 = vadd.f32 %v1189, %v1159
            %v1191 = vadd.f32 %v1190, %v1160
            %v1192 = vadd.f32 %v1191, %v1161
            %v1193 = vadd.f32 %v1192, %v1162
            %v1194 = vadd.f32 %v1193, %v1163
            %v1195 = vadd.f32 %v1194, %v1164
            %v1196 = vadd.f32 %v1195, %v1165
            %v1197 = vadd.f32 %v1196, %v1166
            %v1198 = vadd.f32 %v1197, %v1167
            %v1199 = vadd.f32 %v1198, %v1168
            %v1200 = vadd.f32 %v1199, %v1169
            %v1201 = vadd.f32 %v1200, %v1170
            %v1202 = vadd.f32 %v1201, %v1171
            %v1203 = vadd.f32 %v1202, %v1172
            %v1204 = vadd.f32 %v1203, %v1173
            %v1205 = vadd.f32 %v1204, %v1174
            %v1206 = vadd.f32 %v1205, %v1175
            %v1207 = vadd.f32 %v1206, %v1176
            %v1208 = vadd.f32 %v1207, %v1177
            %v1209 = vadd.f32 %v1208, %v1178
            %v1210 = vadd.f32 %v1209, %v1179
            %v1211 = vadd.f32 %v1210, %v1180
            %v1212 = vadd.f32 %v1211, %v1181
            %v1213 = vadd.f32 %v1212, %v1182
            %v1214 = vadd.f32 %v1213, %v1183
            %v1215 = vrot.slane %v1214, 4
            %v1216 = vadd.f32 %v1214, %v1215
            %v1217 = vrot.slane %v1216, 2
            %v1218 = vadd.f32 %v1216, %v1217
            %v1219 = vrot.slane %v1218, 1
            %v1220 = vadd.f32 %v1218, %v1219
            %v1221 = vadd.f32 %v1151, %v1220
            %1222 = vst [vmem:[#allocation3 + $0x1] sm:$0x1] %v1221
          $region64: #{tpu_custom_call.1} parent=59 // pred_fallthru
            _
          // Predicated region
          $region65: #{tpu_custom_call.1} parent=59 // pred_check
            %p1223 = pneg %p277
          $region66: #{tpu_custom_call.1} parent=59 // pred_check_branch
            %1225 = sbr.rel (%p1223) target = $region68
          $region67: #{tpu_custom_call.1} parent=59 // pred_region
            %v1226 = vld [vmem:[#allocation5] sm:$0x1]
            %v1227 = vperm.slane %v1226, 0
            %v1228 = vmul.f32 %v997, %v1227
            %v1229 = vmul.f32 %v999, %v1227
            %v1230 = vmul.f32 %v1002, %v1227
            %v1231 = vmul.f32 %v1004, %v1227
            %v1232 = vmul.f32 %v1007, %v1227
            %v1233 = vmul.f32 %v1009, %v1227
            %v1234 = vmul.f32 %v1012, %v1227
            %v1235 = vmul.f32 %v1014, %v1227
            %v1236 = vmul.f32 %v1017, %v1227
            %v1237 = vmul.f32 %v1019, %v1227
            %v1238 = vmul.f32 %v1022, %v1227
            %v1239 = vmul.f32 %v1024, %v1227
            %v1240 = vmul.f32 %v1027, %v1227
            %v1241 = vmul.f32 %v1029, %v1227
            %v1242 = vmul.f32 %v1032, %v1227
            %v1243 = vmul.f32 %v1034, %v1227
            %v1244 = vmul.f32 %v1037, %v1227
            %v1245 = vmul.f32 %v1039, %v1227
            %v1246 = vmul.f32 %v1042, %v1227
            %v1247 = vmul.f32 %v1044, %v1227
            %v1248 = vmul.f32 %v1047, %v1227
            %v1249 = vmul.f32 %v1049, %v1227
            %v1250 = vmul.f32 %v1052, %v1227
            %v1251 = vmul.f32 %v1054, %v1227
            %v1252 = vmul.f32 %v1057, %v1227
            %v1253 = vmul.f32 %v1059, %v1227
            %v1254 = vmul.f32 %v1062, %v1227
            %v1255 = vmul.f32 %v1064, %v1227
            %v1256 = vmul.f32 %v1067, %v1227
            %v1257 = vmul.f32 %v1069, %v1227
            %v1258 = vmul.f32 %v1072, %v1227
            %v1259 = vmul.f32 %v1074, %v1227
            %v1260 = vld [vmem:[#allocation5 + $0x1] sm:$0x1]
            %v1261 = vperm.slane %v1260, 0
            %v1262 = vadd.f32 %v1228, %v1261
            %v1263 = vadd.f32 %v1229, %v1261
            %v1264 = vadd.f32 %v1230, %v1261
            %v1265 = vadd.f32 %v1231, %v1261
            %v1266 = vadd.f32 %v1232, %v1261
            %v1267 = vadd.f32 %v1233, %v1261
            %v1268 = vadd.f32 %v1234, %v1261
            %v1269 = vadd.f32 %v1235, %v1261
            %v1270 = vadd.f32 %v1236, %v1261
            %v1271 = vadd.f32 %v1237, %v1261
            %v1272 = vadd.f32 %v1238, %v1261
            %v1273 = vadd.f32 %v1239, %v1261
            %v1274 = vadd.f32 %v1240, %v1261
            %v1275 = vadd.f32 %v1241, %v1261
            %v1276 = vadd.f32 %v1242, %v1261
            %v1277 = vadd.f32 %v1243, %v1261
            %v1278 = vadd.f32 %v1244, %v1261
            %v1279 = vadd.f32 %v1245, %v1261
            %v1280 = vadd.f32 %v1246, %v1261
            %v1281 = vadd.f32 %v1247, %v1261
            %v1282 = vadd.f32 %v1248, %v1261
            %v1283 = vadd.f32 %v1249, %v1261
            %v1284 = vadd.f32 %v1250, %v1261
            %v1285 = vadd.f32 %v1251, %v1261
            %v1286 = vadd.f32 %v1252, %v1261
            %v1287 = vadd.f32 %v1253, %v1261
            %v1288 = vadd.f32 %v1254, %v1261
            %v1289 = vadd.f32 %v1255, %v1261
            %v1290 = vadd.f32 %v1256, %v1261
            %v1291 = vadd.f32 %v1257, %v1261
            %v1292 = vadd.f32 %v1258, %v1261
            %v1293 = vadd.f32 %v1259, %v1261
            %v1294 = vmax.f32 %v1262, 0.0
            %v1295 = vmax.f32 %v1263, 0.0
            %v1296 = vmax.f32 %v1264, 0.0
            %v1297 = vmax.f32 %v1265, 0.0
            %v1298 = vmax.f32 %v1266, 0.0
            %v1299 = vmax.f32 %v1267, 0.0
            %v1300 = vmax.f32 %v1268, 0.0
            %v1301 = vmax.f32 %v1269, 0.0
            %v1302 = vmax.f32 %v1270, 0.0
            %v1303 = vmax.f32 %v1271, 0.0
            %v1304 = vmax.f32 %v1272, 0.0
            %v1305 = vmax.f32 %v1273, 0.0
            %v1306 = vmax.f32 %v1274, 0.0
            %v1307 = vmax.f32 %v1275, 0.0
            %v1308 = vmax.f32 %v1276, 0.0
            %v1309 = vmax.f32 %v1277, 0.0
            %v1310 = vmax.f32 %v1278, 0.0
            %v1311 = vmax.f32 %v1279, 0.0
            %v1312 = vmax.f32 %v1280, 0.0
            %v1313 = vmax.f32 %v1281, 0.0
            %v1314 = vmax.f32 %v1282, 0.0
            %v1315 = vmax.f32 %v1283, 0.0
            %v1316 = vmax.f32 %v1284, 0.0
            %v1317 = vmax.f32 %v1285, 0.0
            %v1318 = vmax.f32 %v1286, 0.0
            %v1319 = vmax.f32 %v1287, 0.0
            %v1320 = vmax.f32 %v1288, 0.0
            %v1321 = vmax.f32 %v1289, 0.0
            %v1322 = vmax.f32 %v1290, 0.0
            %v1323 = vmax.f32 %v1291, 0.0
            %v1324 = vmax.f32 %v1292, 0.0
            %v1325 = vmax.f32 %v1293, 0.0
            %1326 = vst [vmem:[%s230] sm:$0xff] %v1294
            %1327 = vst [vmem:[%s230 + $0x8] sm:$0xff] %v1295
            %1328 = vst [vmem:[%s230 + $0x10] sm:$0xff] %v1296
            %1329 = vst [vmem:[%s230 + $0x18] sm:$0xff] %v1297
            %1330 = vst [vmem:[%s230 + $0x20] sm:$0xff] %v1298
            %1331 = vst [vmem:[%s230 + $0x28] sm:$0xff] %v1299
            %1332 = vst [vmem:[%s230 + $0x30] sm:$0xff] %v1300
            %1333 = vst [vmem:[%s230 + $0x38] sm:$0xff] %v1301
            %1334 = vst [vmem:[%s230 + $0x40] sm:$0xff] %v1302
            %1335 = vst [vmem:[%s230 + $0x48] sm:$0xff] %v1303
            %1336 = vst [vmem:[%s230 + $0x50] sm:$0xff] %v1304
            %1337 = vst [vmem:[%s230 + $0x58] sm:$0xff] %v1305
            %1338 = vst [vmem:[%s230 + $0x60] sm:$0xff] %v1306
            %1339 = vst [vmem:[%s230 + $0x68] sm:$0xff] %v1307
            %1340 = vst [vmem:[%s230 + $0x70] sm:$0xff] %v1308
            %1341 = vst [vmem:[%s230 + $0x78] sm:$0xff] %v1309
            %1342 = vst [vmem:[%s230 + $0x80] sm:$0xff] %v1310
            %1343 = vst [vmem:[%s230 + $0x88] sm:$0xff] %v1311
            %1344 = vst [vmem:[%s230 + $0x90] sm:$0xff] %v1312
            %1345 = vst [vmem:[%s230 + $0x98] sm:$0xff] %v1313
            %1346 = vst [vmem:[%s230 + $0xa0] sm:$0xff] %v1314
            %1347 = vst [vmem:[%s230 + $0xa8] sm:$0xff] %v1315
            %1348 = vst [vmem:[%s230 + $0xb0] sm:$0xff] %v1316
            %1349 = vst [vmem:[%s230 + $0xb8] sm:$0xff] %v1317
            %1350 = vst [vmem:[%s230 + $0xc0] sm:$0xff] %v1318
            %1351 = vst [vmem:[%s230 + $0xc8] sm:$0xff] %v1319
            %1352 = vst [vmem:[%s230 + $0xd0] sm:$0xff] %v1320
            %1353 = vst [vmem:[%s230 + $0xd8] sm:$0xff] %v1321
            %1354 = vst [vmem:[%s230 + $0xe0] sm:$0xff] %v1322
            %1355 = vst [vmem:[%s230 + $0xe8] sm:$0xff] %v1323
            %1356 = vst [vmem:[%s230 + $0xf0] sm:$0xff] %v1324
            %1357 = vst [vmem:[%s230 + $0xf8] sm:$0xff] %v1325
          $region68: #{tpu_custom_call.1} parent=59 // pred_fallthru
            _
        $region60: #{tpu_custom_call.1} parent=39 // pred_fallthru
          _
        %s1358 = sand.u32 %s149, 1
        %s1359 = scalar_lea.sflag [#allocation7], %s1358
        %s1360 = sand.u32 %s149, 1
        %s1361 = smul.addr %s1360, 256
        %s1362 = scalar_lea.vmem [#allocation6], %s1361
        // Predicated region
        $region69: #{tpu_custom_call.1} parent=39 // pred_check
          %p1363 = pneg %p159
        $region70: #{tpu_custom_call.1} parent=39 // pred_check_branch
          %1365 = sbr.rel (%p1363) target = $region72
        $region71: #{tpu_custom_call.1} parent=39 // pred_region
          %s1366 = smul.u32 32, %s24
          %1368 = vsyncadd %s1359, 0
          %s1369 = smul.addr %s1366, 8
          %s1370 = scalar_lea.hbm %s5, %s1369
          %s1371 = sshll.u32 %s1362, 4
          %s1372 = int_to_ptr.vmem [resolvable:$true] %s1371
          %s1373 = sshll.u32 %s1370, 4
          %s1374 = int_to_ptr.hbm [resolvable:$true] %s1373
          %1379 = dma.vmem_to_hbm [thread:$0]  %s1372, 4096, %s1374, %s1359, 128, 128, 8
        $region72: #{tpu_custom_call.1} parent=39 // pred_fallthru
          _
      $region40: #{tpu_custom_call.1} parent=5 // pred_fallthru
        _
      %p1380 = scmp.le.s32.totalorder 2, %s14
      // Predicated region
      $region73: #{tpu_custom_call.1} parent=5 // pred_check
        %p1381 = pneg %p1380
      $region74: #{tpu_custom_call.1} parent=5 // pred_check_branch
        %1383 = sbr.rel (%p1381) target = $region76
      $region75: #{tpu_custom_call.1} parent=5 // pred_region
        %s1384 = ssub.s32 %s14, 2
        // Predicated region
        $region77: #{tpu_custom_call.1} parent=75 // pred_check
          %p1385 = pneg %p165
        $region78: #{tpu_custom_call.1} parent=75 // pred_check_branch
          %1387 = sbr.rel (%p1385) target = $region80
        $region79: #{tpu_custom_call.1} parent=75 // pred_region
          %s1388 = sand.u32 %s150, 1
          %s1389 = scalar_lea.sflag [#allocation7], %s1388
          %s1390 = sand.u32 %s150, 1
          %s1391 = smul.addr %s1390, 256
          %s1392 = scalar_lea.vmem [#allocation6], %s1391
          %1394 = dma.done %s1389, 4096
        $region80: #{tpu_custom_call.1} parent=75 // pred_fallthru
          _
      $region76: #{tpu_custom_call.1} parent=5 // pred_fallthru
        _
    $region6: #{tpu_custom_call.1} parent=1 // loop_footer
      %s18 = sadd.s32 1, %s14
    $region7: #{tpu_custom_call.1} parent=1 // loop_footer_branch
      %13 = sbr.rel target = $region3
    $region8: #{tpu_custom_call.1} parent=1 // loop_exit
      _
    %1395 = vsyncpa [#allocation7], 1
    %s1396 = scalar_lea.sflag [#allocation7], 1
    %1397 = vsyncpa %s1396, 1

</llo_original>
